<compile_context>
chip_gen: v7x
topology: tpu7x:2x2x1
jax: 0.10.0
libtpu: 0.0.40
codegen_flags: <defaults>
</compile_context>

<pallas_src>
import functools

import jax
import jax.numpy as jnp
from jax import lax
from jax.experimental import pallas as pl
from jax.experimental.pallas import tpu as pltpu

LANE = 128
SUBLANE = 8
BATCH_TILE = 8           # sequences per grid program (fills LHS vreg sublanes)


def _round_up(n, m):
    return ((n + m - 1) // m) * m


def _pad2d(a, rows, cols):
    r, c = a.shape
    return jnp.pad(a, ((0, rows - r), (0, cols - c)))


# ----------------------------------------------------------------------------
# Kernel
# ----------------------------------------------------------------------------
def _rnn_seq_kernel(seq_len, batch_tile,
                    x_ref, w_xh_ref, w_hh_ref, b_h_ref, w_hy_ref, b_y_ref,
                    out_ref, h_final_ref,
                    xh_ref, h_slab_ref):
    """One grid program = one tile of `batch_tile` sequences, full recurrence.

    x_ref:       (S_pad*Bt, I_pad)  time-major inputs: row t*Bt + b
    w_xh_ref:    (I_pad, H_pad)     W_xh^T  (pre-transposed, zero-padded)
    w_hh_ref:    (H_pad, H_pad)     W_hh^T
    b_h_ref:     (1, H_pad)         b_h as a row vector
    w_hy_ref:    (H_pad, O_pad)     W_hy^T
    b_y_ref:     (1, O_pad)         b_y as a row vector
    out_ref:     (S_pad*Bt, O_pad)  lane-dense output slab (time-major)
    h_final_ref: (Bt, H_pad)        final hidden state per sequence
    xh_ref:      (S_pad*Bt, H_pad)  scratch: precomputed input projection
    h_slab_ref:  (S_pad*Bt, H_pad)  scratch: hidden states for all timesteps
    """
    Bt = batch_tile
    total_rows = h_slab_ref.shape[0]
    live_rows = seq_len * Bt

    # (1) Non-recurrent input projection for ALL timesteps in one matmul,
    #     with b_h folded in.
    xh_ref[...] = (
        jnp.dot(x_ref[...], w_xh_ref[...], preferred_element_type=jnp.float32)
        + b_h_ref[...])

    # (2) Recurrence.  Only W_hh stays live in vregs across the unrolled loop.
    # TODO(synk): make W_hh weight-stationary via pltpu.matmul_push_rhs /
    # matmul_acc_lhs / matmul_pop to avoid re-staging the RHS every timestep.
    w_hh = w_hh_ref[...]

    def step(t, h_prev):
        row = pl.multiple_of(t * Bt, SUBLANE)
        xh_t = xh_ref[pl.ds(row, Bt), :]                          # (Bt, H_pad)
        h_new = jnp.maximum(
            jnp.dot(h_prev, w_hh, preferred_element_type=jnp.float32) + xh_t,
            0.0)
        h_slab_ref[pl.ds(row, Bt), :] = h_new
        return h_new

    h0 = jnp.zeros((Bt, w_hh.shape[0]), jnp.float32)              # init_hidden()
    h_final = lax.fori_loop(0, seq_len, step, h0, unroll=True)
    h_final_ref[...] = h_final

    # Padded timestep rows (if any) are zeroed so the epilogue matmul is
    # deterministic; the wrapper never reads them anyway.
    if live_rows < total_rows:                                    # static branch
        h_slab_ref[live_rows:, :] = jnp.zeros(
            (total_rows - live_rows, h_slab_ref.shape[1]), jnp.float32)

    # (3) Deferred output projection: one matmul + one unmasked slab store.
    out_ref[...] = (
        jnp.dot(h_slab_ref[...], w_hy_ref[...],
                preferred_element_type=jnp.float32)
        + b_y_ref[...])


# ----------------------------------------------------------------------------
# Host-side wrappers
# ----------------------------------------------------------------------------
def prepare_params(params, input_size, hidden_size, output_size):
    """Pre-transpose weights to (in, out), make biases lane-major rows and
    zero-pad every lane dimension to a multiple of 128.  Done ONCE."""
    I_pad = _round_up(input_size, LANE)
    H_pad = _round_up(hidden_size, LANE)
    O_pad = _round_up(output_size, LANE)
    prepped = (
        _pad2d(params["W_xh"].T.astype(jnp.float32), I_pad, H_pad),   # (I_pad, H_pad)
        _pad2d(params["W_hh"].T.astype(jnp.float32), H_pad, H_pad),   # (H_pad, H_pad)
        _pad2d(params["b_h"].T.astype(jnp.float32), 1, H_pad),        # (1, H_pad)
        _pad2d(params["W_hy"].T.astype(jnp.float32), H_pad, O_pad),   # (H_pad, O_pad)
        _pad2d(params["b_y"].T.astype(jnp.float32), 1, O_pad),        # (1, O_pad)
    )
    return prepped, (I_pad, H_pad, O_pad)


@functools.partial(jax.jit,
                   static_argnames=("hidden_size", "output_size", "batch_tile"))
def rnn_predict(sentences, w_xh_t, w_hh_t, b_h_row, w_hy_t, b_y_row,
                *, hidden_size, output_size, batch_tile=BATCH_TILE):
    """Batched Pallas equivalent of RNN.predict().

    sentences: (B, S, input_size) -> (outputs (B, S, output_size),
                                      final hidden (B, hidden_size))
    """
    B, S, I = sentences.shape
    I_pad, H_pad = w_xh_t.shape
    O_pad = w_hy_t.shape[1]
    S_pad = _round_up(S, SUBLANE)
    Bt = batch_tile
    B_pad = _round_up(B, Bt)
    n_tiles = B_pad // Bt

    # Time-major, batch-tiled layout: x_tiles[g, t*Bt + b, :].
    x = jnp.zeros((S_pad, B_pad, I_pad), jnp.float32)
    x = x.at[:S, :B, :I].set(jnp.swapaxes(sentences.astype(jnp.float32), 0, 1))
    x_tiles = (x.reshape(S_pad, n_tiles, Bt, I_pad)
                .transpose(1, 0, 2, 3)
                .reshape(n_tiles, S_pad * Bt, I_pad))

    kernel = functools.partial(_rnn_seq_kernel, S, Bt)

    out_tiles, h_tiles = pl.pallas_call(
        kernel,
        out_shape=(jax.ShapeDtypeStruct((n_tiles, S_pad * Bt, O_pad), jnp.float32),
                   jax.ShapeDtypeStruct((n_tiles, Bt, H_pad), jnp.float32)),
        grid_spec=pltpu.PrefetchScalarGridSpec(
            num_scalar_prefetch=0,
            grid=(n_tiles,),
            in_specs=[
                pl.BlockSpec((None, S_pad * Bt, I_pad), lambda g: (g, 0, 0)),
                pl.BlockSpec((I_pad, H_pad), lambda g: (0, 0)),
                pl.BlockSpec((H_pad, H_pad), lambda g: (0, 0)),
                pl.BlockSpec((1, H_pad), lambda g: (0, 0)),
                pl.BlockSpec((H_pad, O_pad), lambda g: (0, 0)),
                pl.BlockSpec((1, O_pad), lambda g: (0, 0)),
            ],
            out_specs=(
                pl.BlockSpec((None, S_pad * Bt, O_pad), lambda g: (g, 0, 0)),
                pl.BlockSpec((None, Bt, H_pad), lambda g: (g, 0, 0)),
            ),
            scratch_shapes=[
                pltpu.VMEM((S_pad * Bt, H_pad), jnp.float32),   # xh slab
                pltpu.VMEM((S_pad * Bt, H_pad), jnp.float32),   # hidden slab
            ],
        ),
        compiler_params=pltpu.CompilerParams(
            dimension_semantics=("parallel",),        # v7x: shard tiles over 2 TCs
            vmem_limit_bytes=32 * 1024 * 1024,
        ),
    )(x_tiles, w_xh_t, w_hh_t, b_h_row, w_hy_t, b_y_row)

    # Un-tile / un-pad (padded rows/lanes are never read).
    outs = (out_tiles.reshape(n_tiles, S_pad, Bt, O_pad)
                     .transpose(0, 2, 1, 3)
                     .reshape(B_pad, S_pad, O_pad)[:B, :S, :output_size])
    hidden = h_tiles.reshape(B_pad, H_pad)[:B, :hidden_size]
    return outs, hidden


# ----------------------------------------------------------------------------
# Parameter init + pure-JAX reference (verification only)
# ----------------------------------------------------------------------------
def xavier_uniform(key, shape):
    """Matches torch.nn.init.xavier_uniform_ for a 2-D tensor (out, in)."""
    fan_out, fan_in = shape
    bound = (6.0 / (fan_in + fan_out)) ** 0.5
    return jax.random.uniform(key, shape, dtype=jnp.float32,
                              minval=-bound, maxval=bound)


def init_params(key, input_size, hidden_size, output_size):
    k1, k2, k3, k4, k5 = jax.random.split(key, 5)
    return {
        "W_hy": xavier_uniform(k1, (output_size, hidden_size)),
        "W_hh": xavier_uniform(k2, (hidden_size, hidden_size)),
        "b_h":  xavier_uniform(k3, (hidden_size, 1)),
        "W_xh": xavier_uniform(k4, (hidden_size, input_size)),
        "b_y":  xavier_uniform(k5, (output_size, 1)),
    }


def reference_predict(sentences, p, hidden_size):
    """Pure-JAX re-implementation of RNN.predict() per sequence (PyTorch math)."""
    outs, hs = [], []
    for b in range(sentences.shape[0]):
        h = jnp.zeros((1, hidden_size), jnp.float32)
        seq_outs = []
        for t in range(sentences.shape[1]):
            x_col = sentences[b, t].reshape(-1, 1)
            h = jax.nn.relu(p["W_hh"] @ h.T + p["W_xh"] @ x_col + p["b_h"]).T
            seq_outs.append((p["W_hy"] @ h.T + p["b_y"]).T[0])
        outs.append(jnp.stack(seq_outs))
        hs.append(h[0])
    return jnp.stack(outs), jnp.stack(hs)


if __name__ == "__main__":
    input_size, hidden_size, output_size = 16, 32, 8
    seq_len, batch = 8, 16          # 2 batch tiles of 8 -> grid=(2,) "parallel"

    key = jax.random.PRNGKey(0)
    kp, kx = jax.random.split(key)
    params = init_params(kp, input_size, hidden_size, output_size)

    # A small batch of "sentences" of word vectors, processed like RNN.predict().
    sentences = jax.random.normal(kx, (batch, seq_len, input_size),
                                  dtype=jnp.float32)

    # One-time weight prep (transpose + lane padding), then ONE fused, jitted call.
    prepped, _dims = prepare_params(params, input_size, hidden_size, output_size)
    outputs, hidden = rnn_predict(sentences, *prepped,
                                  hidden_size=hidden_size,
                                  output_size=output_size)
    jax.block_until_ready((outputs, hidden))

    # Correctness check against the pure-JAX PyTorch-equivalent reference.
    outs_ref, h_ref = reference_predict(sentences, params, hidden_size)
    assert outputs.shape == (batch, seq_len, output_size)
    assert hidden.shape == (batch, hidden_size)
    assert jnp.allclose(outputs, outs_ref, atol=1e-5, rtol=1e-5)
    assert jnp.allclose(hidden, h_ref, atol=1e-5, rtol=1e-5)
    print("KERNEL_OK")
</pallas_src>

<mosaic_0001>
module attributes {stable_mosaic.version = 11 : i64} {
  func.func @_rnn_seq_kernel(%arg0: i32, %arg1: memref<1x64x128xf32, #tpu.memory_space<vmem>>, %arg2: memref<128x128xf32, #tpu.memory_space<vmem>>, %arg3: memref<128x128xf32, #tpu.memory_space<vmem>>, %arg4: memref<1x128xf32, #tpu.memory_space<vmem>>, %arg5: memref<128x128xf32, #tpu.memory_space<vmem>>, %arg6: memref<1x128xf32, #tpu.memory_space<vmem>>, %arg7: memref<1x64x128xf32, #tpu.memory_space<vmem>>, %arg8: memref<1x8x128xf32, #tpu.memory_space<vmem>>, %arg9: memref<64x128xf32, #tpu.memory_space<vmem>>, %arg10: memref<64x128xf32, #tpu.memory_space<vmem>>) attributes {dimension_semantics = [#tpu.dimension_semantics<parallel>], iteration_bounds = array<i64: 2>, scalar_prefetch = 0 : i64, scratch_operands = 2 : i64, tpu.core_type = #tpu.core_type<tc>, window_params = [{transform_indices = @transform_0, window_bounds = array<i64: 1, 64, 128>}, {pipeline_mode = #tpu.pipeline_mode<synchronous>, transform_indices = @transform_1, window_bounds = array<i64: 128, 128>}, {pipeline_mode = #tpu.pipeline_mode<synchronous>, transform_indices = @transform_2, window_bounds = array<i64: 128, 128>}, {pipeline_mode = #tpu.pipeline_mode<synchronous>, transform_indices = @transform_3, window_bounds = array<i64: 1, 128>}, {pipeline_mode = #tpu.pipeline_mode<synchronous>, transform_indices = @transform_4, window_bounds = array<i64: 128, 128>}, {pipeline_mode = #tpu.pipeline_mode<synchronous>, transform_indices = @transform_5, window_bounds = array<i64: 1, 128>}, {transform_indices = @transform_6, window_bounds = array<i64: 1, 64, 128>}, {transform_indices = @transform_7, window_bounds = array<i64: 1, 8, 128>}]} {
    %c0 = arith.constant 0 : index
    %c0_0 = arith.constant 0 : index
    %c0_1 = arith.constant 0 : index
    %0 = vector.load %arg1[%c0, %c0_0, %c0_1] : memref<1x64x128xf32, #tpu.memory_space<vmem>>, vector<1x64x128xf32>
    %1 = vector.shape_cast %0 : vector<1x64x128xf32> to vector<64x128xf32>
    %c0_2 = arith.constant 0 : index
    %c0_3 = arith.constant 0 : index
    %2 = vector.load %arg2[%c0_2, %c0_3] : memref<128x128xf32, #tpu.memory_space<vmem>>, vector<128x128xf32>
    %cst = arith.constant dense<0.000000e+00> : vector<64x128xf32>
    %3 = tpu.matmul %1, %2, %cst {dimension_numbers = #tpu.dot_dimension_numbers<[1], [0], [0], [1], [0, 0, 1, 1], [], []>} : vector<64x128xf32>, vector<128x128xf32>, vector<64x128xf32> -> vector<64x128xf32>
    %c0_4 = arith.constant 0 : index
    %c0_5 = arith.constant 0 : index
    %4 = vector.load %arg4[%c0_4, %c0_5] : memref<1x128xf32, #tpu.memory_space<vmem>>, vector<1x128xf32>
    %5 = vector.broadcast %4 : vector<1x128xf32> to vector<64x128xf32>
    %6 = arith.addf %3, %5 : vector<64x128xf32>
    %c0_6 = arith.constant 0 : index
    %c0_7 = arith.constant 0 : index
    %7 = vector.load %arg9[%c0_6, %c0_7] : memref<64x128xf32, #tpu.memory_space<vmem>>, vector<64x128xf32>
    tpu.vector_store %arg9[%c0_6, %c0_7], %6 {strides = array<i32>} : memref<64x128xf32, #tpu.memory_space<vmem>>, vector<64x128xf32>,
    %c0_8 = arith.constant 0 : index
    %c0_9 = arith.constant 0 : index
    %8 = vector.load %arg3[%c0_8, %c0_9] : memref<128x128xf32, #tpu.memory_space<vmem>>, vector<128x128xf32>
    %cst_10 = arith.constant 0.000000e+00 : f32
    %9 = vector.broadcast %cst_10 : f32 to vector<8x128xf32>
    %c0_i32 = arith.constant 0 : i32
    %c8_i32 = arith.constant 8 : i32
    %10 = arith.muli %c0_i32, %c8_i32 : i32
    %11 = tpu.assume_multiple %10, 8 : i32
    %12 = arith.index_cast %11 : i32 to index
    %c0_11 = arith.constant 0 : index
    %13 = vector.load %arg9[%12, %c0_11] : memref<64x128xf32, #tpu.memory_space<vmem>>, vector<8x128xf32>
    %cst_12 = arith.constant dense<0.000000e+00> : vector<8x128xf32>
    %14 = tpu.matmul %9, %8, %cst_12 {dimension_numbers = #tpu.dot_dimension_numbers<[1], [0], [0], [1], [0, 0, 1, 1], [], []>} : vector<8x128xf32>, vector<128x128xf32>, vector<8x128xf32> -> vector<8x128xf32>
    %15 = arith.addf %14, %13 : vector<8x128xf32>
    %cst_13 = arith.constant 0.000000e+00 : f32
    %16 = vector.broadcast %cst_13 : f32 to vector<8x128xf32>
    %17 = arith.maximumf %15, %16 : vector<8x128xf32>
    %18 = arith.index_cast %11 : i32 to index
    %c0_14 = arith.constant 0 : index
    %19 = vector.load %arg10[%18, %c0_14] : memref<64x128xf32, #tpu.memory_space<vmem>>, vector<8x128xf32>
    tpu.vector_store %arg10[%18, %c0_14], %17 {strides = array<i32>} : memref<64x128xf32, #tpu.memory_space<vmem>>, vector<8x128xf32>,
    %c1_i32 = arith.constant 1 : i32
    %c8_i32_15 = arith.constant 8 : i32
    %20 = arith.muli %c1_i32, %c8_i32_15 : i32
    %21 = tpu.assume_multiple %20, 8 : i32
    %22 = arith.index_cast %21 : i32 to index
    %c0_16 = arith.constant 0 : index
    %23 = vector.load %arg9[%22, %c0_16] : memref<64x128xf32, #tpu.memory_space<vmem>>, vector<8x128xf32>
    %cst_17 = arith.constant dense<0.000000e+00> : vector<8x128xf32>
    %24 = tpu.matmul %17, %8, %cst_17 {dimension_numbers = #tpu.dot_dimension_numbers<[1], [0], [0], [1], [0, 0, 1, 1], [], []>} : vector<8x128xf32>, vector<128x128xf32>, vector<8x128xf32> -> vector<8x128xf32>
    %25 = arith.addf %24, %23 : vector<8x128xf32>
    %cst_18 = arith.constant 0.000000e+00 : f32
    %26 = vector.broadcast %cst_18 : f32 to vector<8x128xf32>
    %27 = arith.maximumf %25, %26 : vector<8x128xf32>
    %28 = arith.index_cast %21 : i32 to index
    %c0_19 = arith.constant 0 : index
    %29 = vector.load %arg10[%28, %c0_19] : memref<64x128xf32, #tpu.memory_space<vmem>>, vector<8x128xf32>
    tpu.vector_store %arg10[%28, %c0_19], %27 {strides = array<i32>} : memref<64x128xf32, #tpu.memory_space<vmem>>, vector<8x128xf32>,
    %c2_i32 = arith.constant 2 : i32
    %c8_i32_20 = arith.constant 8 : i32
    %30 = arith.muli %c2_i32, %c8_i32_20 : i32
    %31 = tpu.assume_multiple %30, 8 : i32
    %32 = arith.index_cast %31 : i32 to index
    %c0_21 = arith.constant 0 : index
    %33 = vector.load %arg9[%32, %c0_21] : memref<64x128xf32, #tpu.memory_space<vmem>>, vector<8x128xf32>
    %cst_22 = arith.constant dense<0.000000e+00> : vector<8x128xf32>
    %34 = tpu.matmul %27, %8, %cst_22 {dimension_numbers = #tpu.dot_dimension_numbers<[1], [0], [0], [1], [0, 0, 1, 1], [], []>} : vector<8x128xf32>, vector<128x128xf32>, vector<8x128xf32> -> vector<8x128xf32>
    %35 = arith.addf %34, %33 : vector<8x128xf32>
    %cst_23 = arith.constant 0.000000e+00 : f32
    %36 = vector.broadcast %cst_23 : f32 to vector<8x128xf32>
    %37 = arith.maximumf %35, %36 : vector<8x128xf32>
    %38 = arith.index_cast %31 : i32 to index
    %c0_24 = arith.constant 0 : index
    %39 = vector.load %arg10[%38, %c0_24] : memref<64x128xf32, #tpu.memory_space<vmem>>, vector<8x128xf32>
    tpu.vector_store %arg10[%38, %c0_24], %37 {strides = array<i32>} : memref<64x128xf32, #tpu.memory_space<vmem>>, vector<8x128xf32>,
    %c3_i32 = arith.constant 3 : i32
    %c8_i32_25 = arith.constant 8 : i32
    %40 = arith.muli %c3_i32, %c8_i32_25 : i32
    %41 = tpu.assume_multiple %40, 8 : i32
    %42 = arith.index_cast %41 : i32 to index
    %c0_26 = arith.constant 0 : index
    %43 = vector.load %arg9[%42, %c0_26] : memref<64x128xf32, #tpu.memory_space<vmem>>, vector<8x128xf32>
    %cst_27 = arith.constant dense<0.000000e+00> : vector<8x128xf32>
    %44 = tpu.matmul %37, %8, %cst_27 {dimension_numbers = #tpu.dot_dimension_numbers<[1], [0], [0], [1], [0, 0, 1, 1], [], []>} : vector<8x128xf32>, vector<128x128xf32>, vector<8x128xf32> -> vector<8x128xf32>
    %45 = arith.addf %44, %43 : vector<8x128xf32>
    %cst_28 = arith.constant 0.000000e+00 : f32
    %46 = vector.broadcast %cst_28 : f32 to vector<8x128xf32>
    %47 = arith.maximumf %45, %46 : vector<8x128xf32>
    %48 = arith.index_cast %41 : i32 to index
    %c0_29 = arith.constant 0 : index
    %49 = vector.load %arg10[%48, %c0_29] : memref<64x128xf32, #tpu.memory_space<vmem>>, vector<8x128xf32>
    tpu.vector_store %arg10[%48, %c0_29], %47 {strides = array<i32>} : memref<64x128xf32, #tpu.memory_space<vmem>>, vector<8x128xf32>,
    %c4_i32 = arith.constant 4 : i32
    %c8_i32_30 = arith.constant 8 : i32
    %50 = arith.muli %c4_i32, %c8_i32_30 : i32
    %51 = tpu.assume_multiple %50, 8 : i32
    %52 = arith.index_cast %51 : i32 to index
    %c0_31 = arith.constant 0 : index
    %53 = vector.load %arg9[%52, %c0_31] : memref<64x128xf32, #tpu.memory_space<vmem>>, vector<8x128xf32>
    %cst_32 = arith.constant dense<0.000000e+00> : vector<8x128xf32>
    %54 = tpu.matmul %47, %8, %cst_32 {dimension_numbers = #tpu.dot_dimension_numbers<[1], [0], [0], [1], [0, 0, 1, 1], [], []>} : vector<8x128xf32>, vector<128x128xf32>, vector<8x128xf32> -> vector<8x128xf32>
    %55 = arith.addf %54, %53 : vector<8x128xf32>
    %cst_33 = arith.constant 0.000000e+00 : f32
    %56 = vector.broadcast %cst_33 : f32 to vector<8x128xf32>
    %57 = arith.maximumf %55, %56 : vector<8x128xf32>
    %58 = arith.index_cast %51 : i32 to index
    %c0_34 = arith.constant 0 : index
    %59 = vector.load %arg10[%58, %c0_34] : memref<64x128xf32, #tpu.memory_space<vmem>>, vector<8x128xf32>
    tpu.vector_store %arg10[%58, %c0_34], %57 {strides = array<i32>} : memref<64x128xf32, #tpu.memory_space<vmem>>, vector<8x128xf32>,
    %c5_i32 = arith.constant 5 : i32
    %c8_i32_35 = arith.constant 8 : i32
    %60 = arith.muli %c5_i32, %c8_i32_35 : i32
    %61 = tpu.assume_multiple %60, 8 : i32
    %62 = arith.index_cast %61 : i32 to index
    %c0_36 = arith.constant 0 : index
    %63 = vector.load %arg9[%62, %c0_36] : memref<64x128xf32, #tpu.memory_space<vmem>>, vector<8x128xf32>
    %cst_37 = arith.constant dense<0.000000e+00> : vector<8x128xf32>
    %64 = tpu.matmul %57, %8, %cst_37 {dimension_numbers = #tpu.dot_dimension_numbers<[1], [0], [0], [1], [0, 0, 1, 1], [], []>} : vector<8x128xf32>, vector<128x128xf32>, vector<8x128xf32> -> vector<8x128xf32>
    %65 = arith.addf %64, %63 : vector<8x128xf32>
    %cst_38 = arith.constant 0.000000e+00 : f32
    %66 = vector.broadcast %cst_38 : f32 to vector<8x128xf32>
    %67 = arith.maximumf %65, %66 : vector<8x128xf32>
    %68 = arith.index_cast %61 : i32 to index
    %c0_39 = arith.constant 0 : index
    %69 = vector.load %arg10[%68, %c0_39] : memref<64x128xf32, #tpu.memory_space<vmem>>, vector<8x128xf32>
    tpu.vector_store %arg10[%68, %c0_39], %67 {strides = array<i32>} : memref<64x128xf32, #tpu.memory_space<vmem>>, vector<8x128xf32>,
    %c6_i32 = arith.constant 6 : i32
    %c8_i32_40 = arith.constant 8 : i32
    %70 = arith.muli %c6_i32, %c8_i32_40 : i32
    %71 = tpu.assume_multiple %70, 8 : i32
    %72 = arith.index_cast %71 : i32 to index
    %c0_41 = arith.constant 0 : index
    %73 = vector.load %arg9[%72, %c0_41] : memref<64x128xf32, #tpu.memory_space<vmem>>, vector<8x128xf32>
    %cst_42 = arith.constant dense<0.000000e+00> : vector<8x128xf32>
    %74 = tpu.matmul %67, %8, %cst_42 {dimension_numbers = #tpu.dot_dimension_numbers<[1], [0], [0], [1], [0, 0, 1, 1], [], []>} : vector<8x128xf32>, vector<128x128xf32>, vector<8x128xf32> -> vector<8x128xf32>
    %75 = arith.addf %74, %73 : vector<8x128xf32>
    %cst_43 = arith.constant 0.000000e+00 : f32
    %76 = vector.broadcast %cst_43 : f32 to vector<8x128xf32>
    %77 = arith.maximumf %75, %76 : vector<8x128xf32>
    %78 = arith.index_cast %71 : i32 to index
    %c0_44 = arith.constant 0 : index
    %79 = vector.load %arg10[%78, %c0_44] : memref<64x128xf32, #tpu.memory_space<vmem>>, vector<8x128xf32>
    tpu.vector_store %arg10[%78, %c0_44], %77 {strides = array<i32>} : memref<64x128xf32, #tpu.memory_space<vmem>>, vector<8x128xf32>,
    %c7_i32 = arith.constant 7 : i32
    %c8_i32_45 = arith.constant 8 : i32
    %80 = arith.muli %c7_i32, %c8_i32_45 : i32
    %81 = tpu.assume_multiple %80, 8 : i32
    %82 = arith.index_cast %81 : i32 to index
    %c0_46 = arith.constant 0 : index
    %83 = vector.load %arg9[%82, %c0_46] : memref<64x128xf32, #tpu.memory_space<vmem>>, vector<8x128xf32>
    %cst_47 = arith.constant dense<0.000000e+00> : vector<8x128xf32>
    %84 = tpu.matmul %77, %8, %cst_47 {dimension_numbers = #tpu.dot_dimension_numbers<[1], [0], [0], [1], [0, 0, 1, 1], [], []>} : vector<8x128xf32>, vector<128x128xf32>, vector<8x128xf32> -> vector<8x128xf32>
    %85 = arith.addf %84, %83 : vector<8x128xf32>
    %cst_48 = arith.constant 0.000000e+00 : f32
    %86 = vector.broadcast %cst_48 : f32 to vector<8x128xf32>
    %87 = arith.maximumf %85, %86 : vector<8x128xf32>
    %88 = arith.index_cast %81 : i32 to index
    %c0_49 = arith.constant 0 : index
    %89 = vector.load %arg10[%88, %c0_49] : memref<64x128xf32, #tpu.memory_space<vmem>>, vector<8x128xf32>
    tpu.vector_store %arg10[%88, %c0_49], %87 {strides = array<i32>} : memref<64x128xf32, #tpu.memory_space<vmem>>, vector<8x128xf32>,
    %c8_i32_50 = arith.constant 8 : i32
    %c0_51 = arith.constant 0 : index
    %c0_52 = arith.constant 0 : index
    %c0_53 = arith.constant 0 : index
    %90 = vector.load %arg8[%c0_51, %c0_52, %c0_53] : memref<1x8x128xf32, #tpu.memory_space<vmem>>, vector<1x8x128xf32>
    %91 = vector.shape_cast %90 : vector<1x8x128xf32> to vector<8x128xf32>
    %92 = vector.shape_cast %87 : vector<8x128xf32> to vector<1x8x128xf32>
    tpu.vector_store %arg8[%c0_51, %c0_52, %c0_53], %92 {strides = array<i32>} : memref<1x8x128xf32, #tpu.memory_space<vmem>>, vector<1x8x128xf32>,
    %c0_54 = arith.constant 0 : index
    %c0_55 = arith.constant 0 : index
    %93 = vector.load %arg10[%c0_54, %c0_55] : memref<64x128xf32, #tpu.memory_space<vmem>>, vector<64x128xf32>
    %c0_56 = arith.constant 0 : index
    %c0_57 = arith.constant 0 : index
    %94 = vector.load %arg5[%c0_56, %c0_57] : memref<128x128xf32, #tpu.memory_space<vmem>>, vector<128x128xf32>
    %cst_58 = arith.constant dense<0.000000e+00> : vector<64x128xf32>
    %95 = tpu.matmul %93, %94, %cst_58 {dimension_numbers = #tpu.dot_dimension_numbers<[1], [0], [0], [1], [0, 0, 1, 1], [], []>} : vector<64x128xf32>, vector<128x128xf32>, vector<64x128xf32> -> vector<64x128xf32>
    %c0_59 = arith.constant 0 : index
    %c0_60 = arith.constant 0 : index
    %96 = vector.load %arg6[%c0_59, %c0_60] : memref<1x128xf32, #tpu.memory_space<vmem>>, vector<1x128xf32>
    %97 = vector.broadcast %96 : vector<1x128xf32> to vector<64x128xf32>
    %98 = arith.addf %95, %97 : vector<64x128xf32>
    %c0_61 = arith.constant 0 : index
    %c0_62 = arith.constant 0 : index
    %c0_63 = arith.constant 0 : index
    %99 = vector.load %arg7[%c0_61, %c0_62, %c0_63] : memref<1x64x128xf32, #tpu.memory_space<vmem>>, vector<1x64x128xf32>
    %100 = vector.shape_cast %99 : vector<1x64x128xf32> to vector<64x128xf32>
    %101 = vector.shape_cast %98 : vector<64x128xf32> to vector<1x64x128xf32>
    tpu.vector_store %arg7[%c0_61, %c0_62, %c0_63], %101 {strides = array<i32>} : memref<1x64x128xf32, #tpu.memory_space<vmem>>, vector<1x64x128xf32>,
    return
  }
  func.func @transform_0(%arg0: i32) -> (i32, i32, i32) {
    %c0_i32 = arith.constant 0 : i32
    %c0_i32_0 = arith.constant 0 : i32
    %c0_i32_1 = arith.constant 0 : i32
    return %arg0, %c0_i32, %c0_i32_0 : i32, i32, i32
  }
  func.func @transform_1(%arg0: i32) -> (i32, i32) {
    %c0_i32 = arith.constant 0 : i32
    %c0_i32_0 = arith.constant 0 : i32
    %c0_i32_1 = arith.constant 0 : i32
    return %c0_i32, %c0_i32_0 : i32, i32
  }
  func.func @transform_2(%arg0: i32) -> (i32, i32) {
    %c0_i32 = arith.constant 0 : i32
    %c0_i32_0 = arith.constant 0 : i32
    %c0_i32_1 = arith.constant 0 : i32
    return %c0_i32, %c0_i32_0 : i32, i32
  }
  func.func @transform_3(%arg0: i32) -> (i32, i32) {
    %c0_i32 = arith.constant 0 : i32
    %c0_i32_0 = arith.constant 0 : i32
    %c0_i32_1 = arith.constant 0 : i32
    return %c0_i32, %c0_i32_0 : i32, i32
  }
  func.func @transform_4(%arg0: i32) -> (i32, i32) {
    %c0_i32 = arith.constant 0 : i32
    %c0_i32_0 = arith.constant 0 : i32
    %c0_i32_1 = arith.constant 0 : i32
    return %c0_i32, %c0_i32_0 : i32, i32
  }
  func.func @transform_5(%arg0: i32) -> (i32, i32) {
    %c0_i32 = arith.constant 0 : i32
    %c0_i32_0 = arith.constant 0 : i32
    %c0_i32_1 = arith.constant 0 : i32
    return %c0_i32, %c0_i32_0 : i32, i32
  }
  func.func @transform_6(%arg0: i32) -> (i32, i32, i32) {
    %c0_i32 = arith.constant 0 : i32
    %c0_i32_0 = arith.constant 0 : i32
    %c0_i32_1 = arith.constant 0 : i32
    return %arg0, %c0_i32, %c0_i32_0 : i32, i32, i32
  }
  func.func @transform_7(%arg0: i32) -> (i32, i32, i32) {
    %c0_i32 = arith.constant 0 : i32
    %c0_i32_0 = arith.constant 0 : i32
    %c0_i32_1 = arith.constant 0 : i32
    return %arg0, %c0_i32, %c0_i32_0 : i32, i32, i32
  }
}

</mosaic_0001>

<llo_original>
// kernel: rnn_predict.1
$region0: #{rnn_predict.1}
  #allocation0 [shape = 'u32[]', space=smem, size = 0x4, offset = 0x4, fixed_abs, tag = 'smem constant byte address 0x4 - core index']
  #allocation1 [shape = 'u32[144,128]{1,0:T(1,128)}', space=vmem, size = 0x12000, scoped, tag = 'internal scratch']
  #allocation2 [shape = 'f32[64,128]{1,0:T(8,128)}', space=vmem, size = 0x8000, scoped, tag = 'scratch operand']
  #allocation3 [shape = 'f32[64,128]{1,0:T(8,128)}', space=vmem, size = 0x8000, scoped, tag = 'scratch operand']
  %s0 = inlined_call_operand.vmem [shape: f32[2,64,128], index: 0, kind: input, shape index: {}]
  %s1 = inlined_call_operand.vmem [shape: f32[128,128], index: 1, kind: input, shape index: {}]
  %s2 = inlined_call_operand.vmem [shape: f32[128,128], index: 2, kind: input, shape index: {}]
  %s3 = inlined_call_operand.vmem [shape: f32[1,128], index: 3, kind: input, shape index: {}]
  %s4 = inlined_call_operand.vmem [shape: f32[128,128], index: 4, kind: input, shape index: {}]
  %s5 = inlined_call_operand.vmem [shape: f32[1,128], index: 5, kind: input, shape index: {}]
  %s6 = inlined_call_operand.vmem [shape: f32[2,64,128], index: 6, kind: output, shape index: {0}]
  %s7 = inlined_call_operand.hbm [shape: f32[2,8,128], index: 7, kind: output, shape index: {1}]
  %8 = xla_tuple %s6, %s7
  %s9 = sld [smem:[#allocation0]]
  $region65: #{rnn_predict.1} parent=0
    _
  %s11 = ssub.s32 1, %s9
  %s12 = scalar_select 0, %s11, %s9
  $region1: #{rnn_predict.1} parent=0
    #allocation4 [shape = 'u8[8192]{0}', space=vmem, size = 0x2000, scoped, tag = 'output window, operand 1']
    #allocation5 [shape = 's32[2]{0}', space=sflag, size = 0x8, scoped, tag = 'scoped memory for rnn_predict.1']
    %13 = vsyncpa [#allocation5], 0
    %s14 = scalar_lea.sflag [#allocation5], 1
    %15 = vsyncpa %s14, 0
    loop: start=0, step=1, limit=4
    $region2: #{rnn_predict.1} parent=1 // loop_pre_header
      _
    $region3: #{rnn_predict.1} parent=1 // loop_header
      %s17 = sphi 0, %s21
      %p18 = scmp.ge.s32.totalorder %s17, 4
      %s27 = sphi 0, %s29
      %s30 = sphi 0, %s27
      %s31 = sphi 0, %s30
      %s47 = sphi 0, %s31
      %s51 = sphi 0, %s51
      %s53 = sphi 0, %s51
      %s54 = sphi 0, %s53
      %s68 = sphi 0, %s54
      %s72 = sphi 0, %s72
      %s74 = sphi 0, %s72
      %s75 = sphi 0, %s74
      %s89 = sphi 0, %s75
      %s93 = sphi 0, %s93
      %s95 = sphi 0, %s93
      %s96 = sphi 0, %s95
      %s110 = sphi 0, %s96
      %s114 = sphi 0, %s114
      %s116 = sphi 0, %s114
      %s117 = sphi 0, %s116
      %s131 = sphi 0, %s117
      %s135 = sphi 0, %s135
      %s137 = sphi 0, %s135
      %s138 = sphi 0, %s137
      %s152 = sphi 0, %s138
      %s158 = sphi 0, %s160
      %s161 = sphi 0, %s158
      %s162 = sphi 0, %s161
      %s178 = sphi 0, %s162
      %s184 = sphi 0, %s186
      %s187 = sphi 0, %s184
      %s188 = sphi 0, %s187
      %s204 = sphi 0, %s188
    $region4: #{rnn_predict.1} parent=1 // loop_header_branch
      %20 = sbr.rel (%p18) target = $region8
    $region5: #{rnn_predict.1} parent=1 // loop_body
      %s22 = ssub.s32 %s17, 1
      %s23 = ssub.s32 %s17, 2
      %s24 = sadd.s32 %s17, 1
      %s25 = ssub.s32 %s17, %s24
      %p26 = scmp.eq.s32.totalorder %s25, 0
      %s28 = sadd.s32 %s27, 1
      %s29 = scalar_select %p26, %s27, %s28
      %p32 = pneg %p26
      %p33 = scmp.eq.s32.totalorder %s17, 1
      %p34 = por %p32, %p33
      %p35 = scmp.ne.s32.totalorder %s27, %s30
      %p36 = scmp.eq.s32.totalorder %s17, 0
      %p37 = por %p35, %p36
      %p38 = scmp.ne.s32.totalorder %s27, %s30
      %p39 = scmp.eq.s32.totalorder %s22, 1
      %p40 = por %p38, %p39
      %p41 = scmp.ne.s32.totalorder %s30, %s31
      %p42 = scmp.eq.s32.totalorder %s22, 0
      %p43 = por %p41, %p42
      %p44 = scmp.ne.s32.totalorder %s30, %s31
      %p45 = scmp.eq.s32.totalorder %s23, 1
      %p46 = por %p44, %p45
      %p48 = scmp.ne.s32.totalorder %s31, %s47
      %p49 = scmp.eq.s32.totalorder %s23, 0
      %p50 = por %p48, %p49
      %s52 = sadd.s32 %s51, 1
      %p55 = scmp.eq.s32.totalorder %s17, 1
      %p56 = scmp.ne.s32.totalorder %s51, %s53
      %p57 = scmp.eq.s32.totalorder %s17, 0
      %p58 = por %p56, %p57
      %p59 = scmp.ne.s32.totalorder %s51, %s53
      %p60 = scmp.eq.s32.totalorder %s22, 1
      %p61 = por %p59, %p60
      %p62 = scmp.ne.s32.totalorder %s53, %s54
      %p63 = scmp.eq.s32.totalorder %s22, 0
      %p64 = por %p62, %p63
      %p65 = scmp.ne.s32.totalorder %s53, %s54
      %p66 = scmp.eq.s32.totalorder %s23, 1
      %p67 = por %p65, %p66
      %p69 = scmp.ne.s32.totalorder %s54, %s68
      %p70 = scmp.eq.s32.totalorder %s23, 0
      %p71 = por %p69, %p70
      %s73 = sadd.s32 %s72, 1
      %p76 = scmp.eq.s32.totalorder %s17, 1
      %p77 = scmp.ne.s32.totalorder %s72, %s74
      %p78 = scmp.eq.s32.totalorder %s17, 0
      %p79 = por %p77, %p78
      %p80 = scmp.ne.s32.totalorder %s72, %s74
      %p81 = scmp.eq.s32.totalorder %s22, 1
      %p82 = por %p80, %p81
      %p83 = scmp.ne.s32.totalorder %s74, %s75
      %p84 = scmp.eq.s32.totalorder %s22, 0
      %p85 = por %p83, %p84
      %p86 = scmp.ne.s32.totalorder %s74, %s75
      %p87 = scmp.eq.s32.totalorder %s23, 1
      %p88 = por %p86, %p87
      %p90 = scmp.ne.s32.totalorder %s75, %s89
      %p91 = scmp.eq.s32.totalorder %s23, 0
      %p92 = por %p90, %p91
      %s94 = sadd.s32 %s93, 1
      %p97 = scmp.eq.s32.totalorder %s17, 1
      %p98 = scmp.ne.s32.totalorder %s93, %s95
      %p99 = scmp.eq.s32.totalorder %s17, 0
      %p100 = por %p98, %p99
      %p101 = scmp.ne.s32.totalorder %s93, %s95
      %p102 = scmp.eq.s32.totalorder %s22, 1
      %p103 = por %p101, %p102
      %p104 = scmp.ne.s32.totalorder %s95, %s96
      %p105 = scmp.eq.s32.totalorder %s22, 0
      %p106 = por %p104, %p105
      %p107 = scmp.ne.s32.totalorder %s95, %s96
      %p108 = scmp.eq.s32.totalorder %s23, 1
      %p109 = por %p107, %p108
      %p111 = scmp.ne.s32.totalorder %s96, %s110
      %p112 = scmp.eq.s32.totalorder %s23, 0
      %p113 = por %p111, %p112
      %s115 = sadd.s32 %s114, 1
      %p118 = scmp.eq.s32.totalorder %s17, 1
      %p119 = scmp.ne.s32.totalorder %s114, %s116
      %p120 = scmp.eq.s32.totalorder %s17, 0
      %p121 = por %p119, %p120
      %p122 = scmp.ne.s32.totalorder %s114, %s116
      %p123 = scmp.eq.s32.totalorder %s22, 1
      %p124 = por %p122, %p123
      %p125 = scmp.ne.s32.totalorder %s116, %s117
      %p126 = scmp.eq.s32.totalorder %s22, 0
      %p127 = por %p125, %p126
      %p128 = scmp.ne.s32.totalorder %s116, %s117
      %p129 = scmp.eq.s32.totalorder %s23, 1
      %p130 = por %p128, %p129
      %p132 = scmp.ne.s32.totalorder %s117, %s131
      %p133 = scmp.eq.s32.totalorder %s23, 0
      %p134 = por %p132, %p133
      %s136 = sadd.s32 %s135, 1
      %p139 = scmp.eq.s32.totalorder %s17, 1
      %p140 = scmp.ne.s32.totalorder %s135, %s137
      %p141 = scmp.eq.s32.totalorder %s17, 0
      %p142 = por %p140, %p141
      %p143 = scmp.ne.s32.totalorder %s135, %s137
      %p144 = scmp.eq.s32.totalorder %s22, 1
      %p145 = por %p143, %p144
      %p146 = scmp.ne.s32.totalorder %s137, %s138
      %p147 = scmp.eq.s32.totalorder %s22, 0
      %p148 = por %p146, %p147
      %p149 = scmp.ne.s32.totalorder %s137, %s138
      %p150 = scmp.eq.s32.totalorder %s23, 1
      %p151 = por %p149, %p150
      %p153 = scmp.ne.s32.totalorder %s138, %s152
      %p154 = scmp.eq.s32.totalorder %s23, 0
      %p155 = por %p153, %p154
      %s156 = ssub.s32 %s17, %s24
      %p157 = scmp.eq.s32.totalorder %s156, 0
      %s159 = sadd.s32 %s158, 1
      %s160 = scalar_select %p157, %s158, %s159
      %p163 = pneg %p157
      %p164 = scmp.eq.s32.totalorder %s17, 1
      %p165 = por %p163, %p164
      %p166 = scmp.ne.s32.totalorder %s158, %s161
      %p167 = scmp.eq.s32.totalorder %s17, 0
      %p168 = por %p166, %p167
      %p169 = scmp.ne.s32.totalorder %s158, %s161
      %p170 = scmp.eq.s32.totalorder %s22, 1
      %p171 = por %p169, %p170
      %p172 = scmp.ne.s32.totalorder %s161, %s162
      %p173 = scmp.eq.s32.totalorder %s22, 0
      %p174 = por %p172, %p173
      %p175 = scmp.ne.s32.totalorder %s161, %s162
      %p176 = scmp.eq.s32.totalorder %s23, 1
      %p177 = por %p175, %p176
      %p179 = scmp.ne.s32.totalorder %s162, %s178
      %p180 = scmp.eq.s32.totalorder %s23, 0
      %p181 = por %p179, %p180
      %s182 = ssub.s32 %s17, %s24
      %p183 = scmp.eq.s32.totalorder %s182, 0
      %s185 = sadd.s32 %s184, 1
      %s186 = scalar_select %p183, %s184, %s185
      %p189 = pneg %p183
      %p190 = scmp.eq.s32.totalorder %s17, 1
      %p191 = por %p189, %p190
      %p192 = scmp.ne.s32.totalorder %s184, %s187
      %p193 = scmp.eq.s32.totalorder %s17, 0
      %p194 = por %p192, %p193
      %p195 = scmp.ne.s32.totalorder %s184, %s187
      %p196 = scmp.eq.s32.totalorder %s22, 1
      %p197 = por %p195, %p196
      %p198 = scmp.ne.s32.totalorder %s187, %s188
      %p199 = scmp.eq.s32.totalorder %s22, 0
      %p200 = por %p198, %p199
      %p201 = scmp.ne.s32.totalorder %s187, %s188
      %p202 = scmp.eq.s32.totalorder %s23, 1
      %p203 = por %p201, %p202
      %p205 = scmp.ne.s32.totalorder %s188, %s204
      %p206 = scmp.eq.s32.totalorder %s23, 0
      %p207 = por %p205, %p206
      %p208 = scmp.le.s32.totalorder 1, %s17
      %p209 = scmp.lt.s32.totalorder %s17, 3
      %p210 = pnand %p208, %p209
      %p211 = pneg %p210
      // Predicated region
      $region9: #{rnn_predict.1} parent=5 // pred_check
        _
      $region10: #{rnn_predict.1} parent=5 // pred_check_branch
        %213 = sbr.rel (%p210) target = $region12
      $region11: #{rnn_predict.1} parent=5 // pred_region
        %s214 = ssub.s32 %s17, 1
        // Predicated region
        $region13: #{rnn_predict.1} parent=11 // pred_check
          %p215 = pneg %p64
        $region14: #{rnn_predict.1} parent=11 // pred_check_branch
          %217 = sbr.rel (%p215) target = $region16
        $region15: #{rnn_predict.1} parent=11 // pred_region
          _
        $region16: #{rnn_predict.1} parent=11 // pred_fallthru
          _
        // Predicated region
        $region17: #{rnn_predict.1} parent=11 // pred_check
          %p218 = pneg %p85
        $region18: #{rnn_predict.1} parent=11 // pred_check_branch
          %220 = sbr.rel (%p218) target = $region20
        $region19: #{rnn_predict.1} parent=11 // pred_region
          _
        $region20: #{rnn_predict.1} parent=11 // pred_fallthru
          _
        // Predicated region
        $region21: #{rnn_predict.1} parent=11 // pred_check
          %p221 = pneg %p106
        $region22: #{rnn_predict.1} parent=11 // pred_check_branch
          %223 = sbr.rel (%p221) target = $region24
        $region23: #{rnn_predict.1} parent=11 // pred_region
          _
        $region24: #{rnn_predict.1} parent=11 // pred_fallthru
          _
        // Predicated region
        $region25: #{rnn_predict.1} parent=11 // pred_check
          %p224 = pneg %p127
        $region26: #{rnn_predict.1} parent=11 // pred_check_branch
          %226 = sbr.rel (%p224) target = $region28
        $region27: #{rnn_predict.1} parent=11 // pred_region
          _
        $region28: #{rnn_predict.1} parent=11 // pred_fallthru
          _
        // Predicated region
        $region29: #{rnn_predict.1} parent=11 // pred_check
          %p227 = pneg %p148
        $region30: #{rnn_predict.1} parent=11 // pred_check_branch
          %229 = sbr.rel (%p227) target = $region32
        $region31: #{rnn_predict.1} parent=11 // pred_region
          _
        $region32: #{rnn_predict.1} parent=11 // pred_fallthru
          _
      $region12: #{rnn_predict.1} parent=5 // pred_fallthru
        _
      %p230 = scmp.lt.s32.totalorder %s17, 2
      // Predicated region
      $region33: #{rnn_predict.1} parent=5 // pred_check
        %p231 = pneg %p230
      $region34: #{rnn_predict.1} parent=5 // pred_check_branch
        %233 = sbr.rel (%p231) target = $region36
      $region35: #{rnn_predict.1} parent=5 // pred_region
        // Predicated region
        $region37: #{rnn_predict.1} parent=35 // pred_check
          %p234 = pneg %p37
        $region38: #{rnn_predict.1} parent=35 // pred_check_branch
          %236 = sbr.rel (%p234) target = $region40
        $region39: #{rnn_predict.1} parent=35 // pred_region
          %p237 = scmp.lt.s32.totalorder %s17, 1
          %s238 = scalar_select %p237, %s17, 1
          %s239 = smul.addr %s238, 8
          %s240 = smul.addr %s239, 8
          %s241 = scalar_lea.vmem %s0, %s240
        $region40: #{rnn_predict.1} parent=35 // pred_fallthru
          _
      $region36: #{rnn_predict.1} parent=5 // pred_fallthru
        _
      %p242 = scmp.le.s32.totalorder 1, %s17
      %p243 = scmp.lt.s32.totalorder %s17, 3
      %p244 = pnand %p242, %p243
      %p245 = pneg %p244
      // Predicated region
      $region41: #{rnn_predict.1} parent=5 // pred_check
        _
      $region42: #{rnn_predict.1} parent=5 // pred_check_branch
        %247 = sbr.rel (%p244) target = $region44
      $region43: #{rnn_predict.1} parent=5 // pred_region
        %s248 = ssub.s32 %s17, 1
        %p249 = scmp.lt.s32.totalorder %s22, 1
        %s250 = scalar_select %p249, %s22, 1
        %s251 = smul.addr %s250, 8
        %s252 = smul.addr %s251, 8
        %s253 = scalar_lea.vmem %s0, %s252
        %p254 = pneg %p43
        %p255 = pneg %p40
        %p256 = pneg %p64
        %p257 = pneg %p61
        %p258 = pneg %p85
        %p259 = pneg %p82
        %p260 = pneg %p106
        %p261 = pneg %p103
        %p262 = pneg %p127
        %p263 = pneg %p124
        %p264 = pneg %p148
        %p265 = pneg %p145
        %p266 = pneg %p174
        %p267 = pneg %p171
        %p268 = scmp.lt.s32.totalorder %s22, 1
        %s269 = scalar_select %p268, %s22, 1
        %s270 = smul.addr %s269, 8
        %s271 = smul.addr %s270, 8
        %s272 = scalar_lea.vmem %s6, %s271
        %p273 = pneg %p200
        %p274 = pneg %p197
        %s275 = sand.u32 %s187, 1
        %s276 = scalar_lea.sflag [#allocation5], %s275
        %s277 = sand.u32 %s187, 1
        %s278 = smul.addr %s277, 8
        %s279 = scalar_lea.vmem [#allocation4], %s278
        %p280 = scmp.lt.s32.totalorder %s22, 1
        %s281 = scalar_select %p280, %s22, 1
        %s282 = smul.addr %s281, 8
        %s283 = smul.addr %s282, 8
        %s284 = scalar_lea.vmem %s0, %s283
        %p285 = scmp.lt.s32.totalorder %s22, 1
        %s286 = scalar_select %p285, %s22, 1
        %s287 = smul.addr %s286, 8
        %s288 = smul.addr %s287, 8
        %s289 = scalar_lea.vmem %s6, %s288
        %v290 = vld [vmem:[%s284] sm:$0xff]
        %v291 = vld [vmem:[%s284 + $0x8] sm:$0xff]
        %v292 = vld [vmem:[%s284 + $0x10] sm:$0xff]
        %v293 = vld [vmem:[%s284 + $0x18] sm:$0xff]
        %v294 = vld [vmem:[%s284 + $0x20] sm:$0xff]
        %v295 = vld [vmem:[%s284 + $0x28] sm:$0xff]
        %v296 = vld [vmem:[%s284 + $0x30] sm:$0xff]
        %v297 = vld [vmem:[%s284 + $0x38] sm:$0xff]
        %v298 = vld [vmem:[%s1] sm:$0xff]
        %v299 = vld [vmem:[%s1 + $0x8] sm:$0xff]
        %v300 = vld [vmem:[%s1 + $0x10] sm:$0xff]
        %v301 = vld [vmem:[%s1 + $0x18] sm:$0xff]
        %v302 = vld [vmem:[%s1 + $0x20] sm:$0xff]
        %v303 = vld [vmem:[%s1 + $0x28] sm:$0xff]
        %v304 = vld [vmem:[%s1 + $0x30] sm:$0xff]
        %v305 = vld [vmem:[%s1 + $0x38] sm:$0xff]
        %v306 = vld [vmem:[%s1 + $0x40] sm:$0xff]
        %v307 = vld [vmem:[%s1 + $0x48] sm:$0xff]
        %v308 = vld [vmem:[%s1 + $0x50] sm:$0xff]
        %v309 = vld [vmem:[%s1 + $0x58] sm:$0xff]
        %v310 = vld [vmem:[%s1 + $0x60] sm:$0xff]
        %v311 = vld [vmem:[%s1 + $0x68] sm:$0xff]
        %v312 = vld [vmem:[%s1 + $0x70] sm:$0xff]
        %v313 = vld [vmem:[%s1 + $0x78] sm:$0xff]
        %v314 = vld [vmem:[%s3] sm:$0x1]
        %v316 = vlaneseq
        %v317 = vshrl.u32 %v316, 7
        %v318 = vsub.s32 0, %v317
        %v319 = vrot.slane %v314, %v318
        %321 = vmatprep.subr.mxu0 0.0
        %322 = vmatpush1.msra.mxu0 %v298
        %323 = vmatprep.subr.mxu0 0.0
        %324 = vmatpush1.msra.mxu0 %v299
        %325 = vmatprep.subr.mxu0 0.0
        %326 = vmatpush1.msra.mxu0 %v300
        %327 = vmatprep.subr.mxu0 0.0
        %328 = vmatpush1.msra.mxu0 %v301
        %329 = vmatprep.subr.mxu0 0.0
        %330 = vmatpush1.msra.mxu0 %v302
        %331 = vmatprep.subr.mxu0 0.0
        %332 = vmatpush1.msra.mxu0 %v303
        %333 = vmatprep.subr.mxu0 0.0
        %334 = vmatpush1.msra.mxu0 %v304
        %335 = vmatprep.subr.mxu0 0.0
        %336 = vmatpush1.msra.mxu0 %v305
        %337 = vmatprep.subr.mxu0 0.0
        %338 = vmatpush1.msra.mxu0 %v306
        %339 = vmatprep.subr.mxu0 0.0
        %340 = vmatpush1.msra.mxu0 %v307
        %341 = vmatprep.subr.mxu0 0.0
        %342 = vmatpush1.msra.mxu0 %v308
        %343 = vmatprep.subr.mxu0 0.0
        %344 = vmatpush1.msra.mxu0 %v309
        %345 = vmatprep.subr.mxu0 0.0
        %346 = vmatpush1.msra.mxu0 %v310
        %347 = vmatprep.subr.mxu0 0.0
        %348 = vmatpush1.msra.mxu0 %v311
        %349 = vmatprep.subr.mxu0 0.0
        %350 = vmatpush1.msra.mxu0 %v312
        %351 = vmatprep.subr.mxu0 0.0
        %352 = vmatpush1.msra.mxu0 %v313
        %353 = vmatprep.subr.mxu0 0.0
        %354 = vmatpush1.msra.mxu0 0.0
        %355 = vmatprep.subr.mxu0 0.0
        %356 = vmatpush1.msra.mxu0 0.0
        %357 = vmatprep.subr.mxu0 0.0
        %358 = vmatpush1.msra.mxu0 0.0
        %359 = vmatprep.subr.mxu0 0.0
        %360 = vmatpush1.msra.mxu0 0.0
        %361 = vmatprep.subr.mxu0 0.0
        %362 = vmatpush1.msra.mxu0 0.0
        %363 = vmatprep.subr.mxu0 0.0
        %364 = vmatpush1.msra.mxu0 0.0
        %365 = vmatprep.subr.mxu0 0.0
        %366 = vmatpush1.msra.mxu0 0.0
        %367 = vmatprep.subr.mxu0 0.0
        %368 = vmatpush1.msra.mxu0 0.0
        %369 = vmatprep.subr.mxu0 0.0
        %370 = vmatpush1.msra.mxu0 0.0
        %371 = vmatprep.subr.mxu0 0.0
        %372 = vmatpush1.msra.mxu0 0.0
        %373 = vmatprep.subr.mxu0 0.0
        %374 = vmatpush1.msra.mxu0 0.0
        %375 = vmatprep.subr.mxu0 0.0
        %376 = vmatpush1.msra.mxu0 0.0
        %377 = vmatprep.subr.mxu0 0.0
        %378 = vmatpush1.msra.mxu0 0.0
        %379 = vmatprep.subr.mxu0 0.0
        %380 = vmatpush1.msra.mxu0 0.0
        %381 = vmatprep.subr.mxu0 0.0
        %382 = vmatpush1.msra.mxu0 0.0
        %383 = vmatprep.subr.mxu0 0.0
        %384 = vmatpush1.msra.mxu0 0.0
        %385 = vmatprep.mubr.f32.mxu0 0.0
        %386 = vmatmul.mubr.f32.gmra.mrb[0].mxu0 %v290
        %v387 = vpop.f32.mrb[0].mxu0
        %v388 = vadd.f32 %v319, %v387
        %v389 = vpop.f32.mrb[0].mxu0
        %390 = vmatprep.mubr.f32.mxu0 0.0
        %391 = vmatmul.mubr.f32.gmra.mrb[0].mxu0 %v291
        %v392 = vpop.f32.mrb[0].mxu0
        %v393 = vadd.f32 %v319, %v392
        %v394 = vpop.f32.mrb[0].mxu0
        %395 = vmatprep.mubr.f32.mxu0 0.0
        %396 = vmatmul.mubr.f32.gmra.mrb[0].mxu0 %v292
        %v397 = vpop.f32.mrb[0].mxu0
        %v398 = vadd.f32 %v319, %v397
        %v399 = vpop.f32.mrb[0].mxu0
        %400 = vmatprep.mubr.f32.mxu0 0.0
        %401 = vmatmul.mubr.f32.gmra.mrb[0].mxu0 %v293
        %v402 = vpop.f32.mrb[0].mxu0
        %v403 = vadd.f32 %v319, %v402
        %v404 = vpop.f32.mrb[0].mxu0
        %405 = vmatprep.mubr.f32.mxu0 0.0
        %406 = vmatmul.mubr.f32.gmra.mrb[0].mxu0 %v294
        %v407 = vpop.f32.mrb[0].mxu0
        %v408 = vadd.f32 %v319, %v407
        %v409 = vpop.f32.mrb[0].mxu0
        %410 = vmatprep.mubr.f32.mxu0 0.0
        %411 = vmatmul.mubr.f32.gmra.mrb[0].mxu0 %v295
        %v412 = vpop.f32.mrb[0].mxu0
        %v413 = vadd.f32 %v319, %v412
        %v414 = vpop.f32.mrb[0].mxu0
        %415 = vmatprep.mubr.f32.mxu0 0.0
        %416 = vmatmul.mubr.f32.gmra.mrb[0].mxu0 %v296
        %v417 = vpop.f32.mrb[0].mxu0
        %v418 = vadd.f32 %v319, %v417
        %v419 = vpop.f32.mrb[0].mxu0
        %420 = vmatprep.mubr.f32.mxu0 0.0
        %421 = vmatmul.mubr.f32.gmra.mrb[0].mxu0 %v297
        %v422 = vpop.f32.mrb[0].mxu0
        %v423 = vadd.f32 %v319, %v422
        %v424 = vpop.f32.mrb[0].mxu0
        %425 = vdwg.mxu0
        %426 = vst [vmem:[#allocation2] sm:$0xff] %v388
        %427 = vst [vmem:[#allocation2 + $0x8] sm:$0xff] %v393
        %428 = vst [vmem:[#allocation2 + $0x10] sm:$0xff] %v398
        %429 = vst [vmem:[#allocation2 + $0x18] sm:$0xff] %v403
        %430 = vst [vmem:[#allocation2 + $0x20] sm:$0xff] %v408
        %431 = vst [vmem:[#allocation2 + $0x28] sm:$0xff] %v413
        %432 = vst [vmem:[#allocation2 + $0x30] sm:$0xff] %v418
        %433 = vst [vmem:[#allocation2 + $0x38] sm:$0xff] %v423
        %v434 = vld [vmem:[%s2] sm:$0xff]
        %v435 = vld [vmem:[%s2 + $0x8] sm:$0xff]
        %v436 = vld [vmem:[%s2 + $0x10] sm:$0xff]
        %v437 = vld [vmem:[%s2 + $0x18] sm:$0xff]
        %v438 = vld [vmem:[%s2 + $0x20] sm:$0xff]
        %v439 = vld [vmem:[%s2 + $0x28] sm:$0xff]
        %v440 = vld [vmem:[%s2 + $0x30] sm:$0xff]
        %v441 = vld [vmem:[%s2 + $0x38] sm:$0xff]
        %v442 = vld [vmem:[%s2 + $0x40] sm:$0xff]
        %v443 = vld [vmem:[%s2 + $0x48] sm:$0xff]
        %v444 = vld [vmem:[%s2 + $0x50] sm:$0xff]
        %v445 = vld [vmem:[%s2 + $0x58] sm:$0xff]
        %v446 = vld [vmem:[%s2 + $0x60] sm:$0xff]
        %v447 = vld [vmem:[%s2 + $0x68] sm:$0xff]
        %v448 = vld [vmem:[%s2 + $0x70] sm:$0xff]
        %v449 = vld [vmem:[%s2 + $0x78] sm:$0xff]
        %v450 = vld [vmem:[#allocation2] sm:$0xff]
        %451 = vmatprep.subr.mxu0 0.0
        %452 = vmatpush1.msra.mxu0 %v434
        %453 = vmatprep.subr.mxu0 0.0
        %454 = vmatpush1.msra.mxu0 %v435
        %455 = vmatprep.subr.mxu0 0.0
        %456 = vmatpush1.msra.mxu0 %v436
        %457 = vmatprep.subr.mxu0 0.0
        %458 = vmatpush1.msra.mxu0 %v437
        %459 = vmatprep.subr.mxu0 0.0
        %460 = vmatpush1.msra.mxu0 %v438
        %461 = vmatprep.subr.mxu0 0.0
        %462 = vmatpush1.msra.mxu0 %v439
        %463 = vmatprep.subr.mxu0 0.0
        %464 = vmatpush1.msra.mxu0 %v440
        %465 = vmatprep.subr.mxu0 0.0
        %466 = vmatpush1.msra.mxu0 %v441
        %467 = vmatprep.subr.mxu0 0.0
        %468 = vmatpush1.msra.mxu0 %v442
        %469 = vmatprep.subr.mxu0 0.0
        %470 = vmatpush1.msra.mxu0 %v443
        %471 = vmatprep.subr.mxu0 0.0
        %472 = vmatpush1.msra.mxu0 %v444
        %473 = vmatprep.subr.mxu0 0.0
        %474 = vmatpush1.msra.mxu0 %v445
        %475 = vmatprep.subr.mxu0 0.0
        %476 = vmatpush1.msra.mxu0 %v446
        %477 = vmatprep.subr.mxu0 0.0
        %478 = vmatpush1.msra.mxu0 %v447
        %479 = vmatprep.subr.mxu0 0.0
        %480 = vmatpush1.msra.mxu0 %v448
        %481 = vmatprep.subr.mxu0 0.0
        %482 = vmatpush1.msra.mxu0 %v449
        %483 = vmatprep.subr.mxu0 0.0
        %484 = vmatpush1.msra.mxu0 0.0
        %485 = vmatprep.subr.mxu0 0.0
        %486 = vmatpush1.msra.mxu0 0.0
        %487 = vmatprep.subr.mxu0 0.0
        %488 = vmatpush1.msra.mxu0 0.0
        %489 = vmatprep.subr.mxu0 0.0
        %490 = vmatpush1.msra.mxu0 0.0
        %491 = vmatprep.subr.mxu0 0.0
        %492 = vmatpush1.msra.mxu0 0.0
        %493 = vmatprep.subr.mxu0 0.0
        %494 = vmatpush1.msra.mxu0 0.0
        %495 = vmatprep.subr.mxu0 0.0
        %496 = vmatpush1.msra.mxu0 0.0
        %497 = vmatprep.subr.mxu0 0.0
        %498 = vmatpush1.msra.mxu0 0.0
        %499 = vmatprep.subr.mxu0 0.0
        %500 = vmatpush1.msra.mxu0 0.0
        %501 = vmatprep.subr.mxu0 0.0
        %502 = vmatpush1.msra.mxu0 0.0
        %503 = vmatprep.subr.mxu0 0.0
        %504 = vmatpush1.msra.mxu0 0.0
        %505 = vmatprep.subr.mxu0 0.0
        %506 = vmatpush1.msra.mxu0 0.0
        %507 = vmatprep.subr.mxu0 0.0
        %508 = vmatpush1.msra.mxu0 0.0
        %509 = vmatprep.subr.mxu0 0.0
        %510 = vmatpush1.msra.mxu0 0.0
        %511 = vmatprep.subr.mxu0 0.0
        %512 = vmatpush1.msra.mxu0 0.0
        %513 = vmatprep.subr.mxu0 0.0
        %514 = vmatpush1.msra.mxu0 0.0
        %515 = vmatprep.mubr.f32.mxu0 0.0
        %516 = vmatmul.mubr.f32.gmra.mrb[0].mxu0 0.0
        %v517 = vpop.f32.mrb[0].mxu0
        %v518 = vadd.f32 %v450, %v517
        %v519 = vpop.f32.mrb[0].mxu0
        %520 = vdwg.mxu0
        %v521 = vmax.f32 %v518, 0.0
        %522 = vst [vmem:[#allocation3] sm:$0xff] %v521
        %s523 = scalar_lea.vmem [#allocation2], 8
        %v524 = vld [vmem:[%s523] sm:$0xff]
        %525 = vmatprep.subr.mxu0 0.0
        %526 = vmatpush1.msra.mxu0 %v434
        %527 = vmatprep.subr.mxu0 0.0
        %528 = vmatpush1.msra.mxu0 %v435
        %529 = vmatprep.subr.mxu0 0.0
        %530 = vmatpush1.msra.mxu0 %v436
        %531 = vmatprep.subr.mxu0 0.0
        %532 = vmatpush1.msra.mxu0 %v437
        %533 = vmatprep.subr.mxu0 0.0
        %534 = vmatpush1.msra.mxu0 %v438
        %535 = vmatprep.subr.mxu0 0.0
        %536 = vmatpush1.msra.mxu0 %v439
        %537 = vmatprep.subr.mxu0 0.0
        %538 = vmatpush1.msra.mxu0 %v440
        %539 = vmatprep.subr.mxu0 0.0
        %540 = vmatpush1.msra.mxu0 %v441
        %541 = vmatprep.subr.mxu0 0.0
        %542 = vmatpush1.msra.mxu0 %v442
        %543 = vmatprep.subr.mxu0 0.0
        %544 = vmatpush1.msra.mxu0 %v443
        %545 = vmatprep.subr.mxu0 0.0
        %546 = vmatpush1.msra.mxu0 %v444
        %547 = vmatprep.subr.mxu0 0.0
        %548 = vmatpush1.msra.mxu0 %v445
        %549 = vmatprep.subr.mxu0 0.0
        %550 = vmatpush1.msra.mxu0 %v446
        %551 = vmatprep.subr.mxu0 0.0
        %552 = vmatpush1.msra.mxu0 %v447
        %553 = vmatprep.subr.mxu0 0.0
        %554 = vmatpush1.msra.mxu0 %v448
        %555 = vmatprep.subr.mxu0 0.0
        %556 = vmatpush1.msra.mxu0 %v449
        %557 = vmatprep.subr.mxu0 0.0
        %558 = vmatpush1.msra.mxu0 0.0
        %559 = vmatprep.subr.mxu0 0.0
        %560 = vmatpush1.msra.mxu0 0.0
        %561 = vmatprep.subr.mxu0 0.0
        %562 = vmatpush1.msra.mxu0 0.0
        %563 = vmatprep.subr.mxu0 0.0
        %564 = vmatpush1.msra.mxu0 0.0
        %565 = vmatprep.subr.mxu0 0.0
        %566 = vmatpush1.msra.mxu0 0.0
        %567 = vmatprep.subr.mxu0 0.0
        %568 = vmatpush1.msra.mxu0 0.0
        %569 = vmatprep.subr.mxu0 0.0
        %570 = vmatpush1.msra.mxu0 0.0
        %571 = vmatprep.subr.mxu0 0.0
        %572 = vmatpush1.msra.mxu0 0.0
        %573 = vmatprep.subr.mxu0 0.0
        %574 = vmatpush1.msra.mxu0 0.0
        %575 = vmatprep.subr.mxu0 0.0
        %576 = vmatpush1.msra.mxu0 0.0
        %577 = vmatprep.subr.mxu0 0.0
        %578 = vmatpush1.msra.mxu0 0.0
        %579 = vmatprep.subr.mxu0 0.0
        %580 = vmatpush1.msra.mxu0 0.0
        %581 = vmatprep.subr.mxu0 0.0
        %582 = vmatpush1.msra.mxu0 0.0
        %583 = vmatprep.subr.mxu0 0.0
        %584 = vmatpush1.msra.mxu0 0.0
        %585 = vmatprep.subr.mxu0 0.0
        %586 = vmatpush1.msra.mxu0 0.0
        %587 = vmatprep.subr.mxu0 0.0
        %588 = vmatpush1.msra.mxu0 0.0
        %589 = vmatprep.mubr.f32.mxu0 0.0
        %590 = vmatmul.mubr.f32.gmra.mrb[0].mxu0 %v521
        %v591 = vpop.f32.mrb[0].mxu0
        %v592 = vadd.f32 %v524, %v591
        %v593 = vpop.f32.mrb[0].mxu0
        %594 = vdwg.mxu0
        %v595 = vmax.f32 %v592, 0.0
        %s596 = scalar_lea.vmem [#allocation3], 8
        %597 = vst [vmem:[%s596] sm:$0xff] %v595
        %s598 = scalar_lea.vmem [#allocation2], 16
        %v599 = vld [vmem:[%s598] sm:$0xff]
        %600 = vmatprep.subr.mxu0 0.0
        %601 = vmatpush1.msra.mxu0 %v434
        %602 = vmatprep.subr.mxu0 0.0
        %603 = vmatpush1.msra.mxu0 %v435
        %604 = vmatprep.subr.mxu0 0.0
        %605 = vmatpush1.msra.mxu0 %v436
        %606 = vmatprep.subr.mxu0 0.0
        %607 = vmatpush1.msra.mxu0 %v437
        %608 = vmatprep.subr.mxu0 0.0
        %609 = vmatpush1.msra.mxu0 %v438
        %610 = vmatprep.subr.mxu0 0.0
        %611 = vmatpush1.msra.mxu0 %v439
        %612 = vmatprep.subr.mxu0 0.0
        %613 = vmatpush1.msra.mxu0 %v440
        %614 = vmatprep.subr.mxu0 0.0
        %615 = vmatpush1.msra.mxu0 %v441
        %616 = vmatprep.subr.mxu0 0.0
        %617 = vmatpush1.msra.mxu0 %v442
        %618 = vmatprep.subr.mxu0 0.0
        %619 = vmatpush1.msra.mxu0 %v443
        %620 = vmatprep.subr.mxu0 0.0
        %621 = vmatpush1.msra.mxu0 %v444
        %622 = vmatprep.subr.mxu0 0.0
        %623 = vmatpush1.msra.mxu0 %v445
        %624 = vmatprep.subr.mxu0 0.0
        %625 = vmatpush1.msra.mxu0 %v446
        %626 = vmatprep.subr.mxu0 0.0
        %627 = vmatpush1.msra.mxu0 %v447
        %628 = vmatprep.subr.mxu0 0.0
        %629 = vmatpush1.msra.mxu0 %v448
        %630 = vmatprep.subr.mxu0 0.0
        %631 = vmatpush1.msra.mxu0 %v449
        %632 = vmatprep.subr.mxu0 0.0
        %633 = vmatpush1.msra.mxu0 0.0
        %634 = vmatprep.subr.mxu0 0.0
        %635 = vmatpush1.msra.mxu0 0.0
        %636 = vmatprep.subr.mxu0 0.0
        %637 = vmatpush1.msra.mxu0 0.0
        %638 = vmatprep.subr.mxu0 0.0
        %639 = vmatpush1.msra.mxu0 0.0
        %640 = vmatprep.subr.mxu0 0.0
        %641 = vmatpush1.msra.mxu0 0.0
        %642 = vmatprep.subr.mxu0 0.0
        %643 = vmatpush1.msra.mxu0 0.0
        %644 = vmatprep.subr.mxu0 0.0
        %645 = vmatpush1.msra.mxu0 0.0
        %646 = vmatprep.subr.mxu0 0.0
        %647 = vmatpush1.msra.mxu0 0.0
        %648 = vmatprep.subr.mxu0 0.0
        %649 = vmatpush1.msra.mxu0 0.0
        %650 = vmatprep.subr.mxu0 0.0
        %651 = vmatpush1.msra.mxu0 0.0
        %652 = vmatprep.subr.mxu0 0.0
        %653 = vmatpush1.msra.mxu0 0.0
        %654 = vmatprep.subr.mxu0 0.0
        %655 = vmatpush1.msra.mxu0 0.0
        %656 = vmatprep.subr.mxu0 0.0
        %657 = vmatpush1.msra.mxu0 0.0
        %658 = vmatprep.subr.mxu0 0.0
        %659 = vmatpush1.msra.mxu0 0.0
        %660 = vmatprep.subr.mxu0 0.0
        %661 = vmatpush1.msra.mxu0 0.0
        %662 = vmatprep.subr.mxu0 0.0
        %663 = vmatpush1.msra.mxu0 0.0
        %664 = vmatprep.mubr.f32.mxu0 0.0
        %665 = vmatmul.mubr.f32.gmra.mrb[0].mxu0 %v595
        %v666 = vpop.f32.mrb[0].mxu0
        %v667 = vadd.f32 %v599, %v666
        %v668 = vpop.f32.mrb[0].mxu0
        %669 = vdwg.mxu0
        %v670 = vmax.f32 %v667, 0.0
        %s671 = scalar_lea.vmem [#allocation3], 16
        %672 = vst [vmem:[%s671] sm:$0xff] %v670
        %s673 = scalar_lea.vmem [#allocation2], 24
        %v674 = vld [vmem:[%s673] sm:$0xff]
        %675 = vmatprep.subr.mxu0 0.0
        %676 = vmatpush1.msra.mxu0 %v434
        %677 = vmatprep.subr.mxu0 0.0
        %678 = vmatpush1.msra.mxu0 %v435
        %679 = vmatprep.subr.mxu0 0.0
        %680 = vmatpush1.msra.mxu0 %v436
        %681 = vmatprep.subr.mxu0 0.0
        %682 = vmatpush1.msra.mxu0 %v437
        %683 = vmatprep.subr.mxu0 0.0
        %684 = vmatpush1.msra.mxu0 %v438
        %685 = vmatprep.subr.mxu0 0.0
        %686 = vmatpush1.msra.mxu0 %v439
        %687 = vmatprep.subr.mxu0 0.0
        %688 = vmatpush1.msra.mxu0 %v440
        %689 = vmatprep.subr.mxu0 0.0
        %690 = vmatpush1.msra.mxu0 %v441
        %691 = vmatprep.subr.mxu0 0.0
        %692 = vmatpush1.msra.mxu0 %v442
        %693 = vmatprep.subr.mxu0 0.0
        %694 = vmatpush1.msra.mxu0 %v443
        %695 = vmatprep.subr.mxu0 0.0
        %696 = vmatpush1.msra.mxu0 %v444
        %697 = vmatprep.subr.mxu0 0.0
        %698 = vmatpush1.msra.mxu0 %v445
        %699 = vmatprep.subr.mxu0 0.0
        %700 = vmatpush1.msra.mxu0 %v446
        %701 = vmatprep.subr.mxu0 0.0
        %702 = vmatpush1.msra.mxu0 %v447
        %703 = vmatprep.subr.mxu0 0.0
        %704 = vmatpush1.msra.mxu0 %v448
        %705 = vmatprep.subr.mxu0 0.0
        %706 = vmatpush1.msra.mxu0 %v449
        %707 = vmatprep.subr.mxu0 0.0
        %708 = vmatpush1.msra.mxu0 0.0
        %709 = vmatprep.subr.mxu0 0.0
        %710 = vmatpush1.msra.mxu0 0.0
        %711 = vmatprep.subr.mxu0 0.0
        %712 = vmatpush1.msra.mxu0 0.0
        %713 = vmatprep.subr.mxu0 0.0
        %714 = vmatpush1.msra.mxu0 0.0
        %715 = vmatprep.subr.mxu0 0.0
        %716 = vmatpush1.msra.mxu0 0.0
        %717 = vmatprep.subr.mxu0 0.0
        %718 = vmatpush1.msra.mxu0 0.0
        %719 = vmatprep.subr.mxu0 0.0
        %720 = vmatpush1.msra.mxu0 0.0
        %721 = vmatprep.subr.mxu0 0.0
        %722 = vmatpush1.msra.mxu0 0.0
        %723 = vmatprep.subr.mxu0 0.0
        %724 = vmatpush1.msra.mxu0 0.0
        %725 = vmatprep.subr.mxu0 0.0
        %726 = vmatpush1.msra.mxu0 0.0
        %727 = vmatprep.subr.mxu0 0.0
        %728 = vmatpush1.msra.mxu0 0.0
        %729 = vmatprep.subr.mxu0 0.0
        %730 = vmatpush1.msra.mxu0 0.0
        %731 = vmatprep.subr.mxu0 0.0
        %732 = vmatpush1.msra.mxu0 0.0
        %733 = vmatprep.subr.mxu0 0.0
        %734 = vmatpush1.msra.mxu0 0.0
        %735 = vmatprep.subr.mxu0 0.0
        %736 = vmatpush1.msra.mxu0 0.0
        %737 = vmatprep.subr.mxu0 0.0
        %738 = vmatpush1.msra.mxu0 0.0
        %739 = vmatprep.mubr.f32.mxu0 0.0
        %740 = vmatmul.mubr.f32.gmra.mrb[0].mxu0 %v670
        %v741 = vpop.f32.mrb[0].mxu0
        %v742 = vadd.f32 %v674, %v741
        %v743 = vpop.f32.mrb[0].mxu0
        %744 = vdwg.mxu0
        %v745 = vmax.f32 %v742, 0.0
        %s746 = scalar_lea.vmem [#allocation3], 24
        %747 = vst [vmem:[%s746] sm:$0xff] %v745
        %s748 = scalar_lea.vmem [#allocation2], 32
        %v749 = vld [vmem:[%s748] sm:$0xff]
        %750 = vmatprep.subr.mxu0 0.0
        %751 = vmatpush1.msra.mxu0 %v434
        %752 = vmatprep.subr.mxu0 0.0
        %753 = vmatpush1.msra.mxu0 %v435
        %754 = vmatprep.subr.mxu0 0.0
        %755 = vmatpush1.msra.mxu0 %v436
        %756 = vmatprep.subr.mxu0 0.0
        %757 = vmatpush1.msra.mxu0 %v437
        %758 = vmatprep.subr.mxu0 0.0
        %759 = vmatpush1.msra.mxu0 %v438
        %760 = vmatprep.subr.mxu0 0.0
        %761 = vmatpush1.msra.mxu0 %v439
        %762 = vmatprep.subr.mxu0 0.0
        %763 = vmatpush1.msra.mxu0 %v440
        %764 = vmatprep.subr.mxu0 0.0
        %765 = vmatpush1.msra.mxu0 %v441
        %766 = vmatprep.subr.mxu0 0.0
        %767 = vmatpush1.msra.mxu0 %v442
        %768 = vmatprep.subr.mxu0 0.0
        %769 = vmatpush1.msra.mxu0 %v443
        %770 = vmatprep.subr.mxu0 0.0
        %771 = vmatpush1.msra.mxu0 %v444
        %772 = vmatprep.subr.mxu0 0.0
        %773 = vmatpush1.msra.mxu0 %v445
        %774 = vmatprep.subr.mxu0 0.0
        %775 = vmatpush1.msra.mxu0 %v446
        %776 = vmatprep.subr.mxu0 0.0
        %777 = vmatpush1.msra.mxu0 %v447
        %778 = vmatprep.subr.mxu0 0.0
        %779 = vmatpush1.msra.mxu0 %v448
        %780 = vmatprep.subr.mxu0 0.0
        %781 = vmatpush1.msra.mxu0 %v449
        %782 = vmatprep.subr.mxu0 0.0
        %783 = vmatpush1.msra.mxu0 0.0
        %784 = vmatprep.subr.mxu0 0.0
        %785 = vmatpush1.msra.mxu0 0.0
        %786 = vmatprep.subr.mxu0 0.0
        %787 = vmatpush1.msra.mxu0 0.0
        %788 = vmatprep.subr.mxu0 0.0
        %789 = vmatpush1.msra.mxu0 0.0
        %790 = vmatprep.subr.mxu0 0.0
        %791 = vmatpush1.msra.mxu0 0.0
        %792 = vmatprep.subr.mxu0 0.0
        %793 = vmatpush1.msra.mxu0 0.0
        %794 = vmatprep.subr.mxu0 0.0
        %795 = vmatpush1.msra.mxu0 0.0
        %796 = vmatprep.subr.mxu0 0.0
        %797 = vmatpush1.msra.mxu0 0.0
        %798 = vmatprep.subr.mxu0 0.0
        %799 = vmatpush1.msra.mxu0 0.0
        %800 = vmatprep.subr.mxu0 0.0
        %801 = vmatpush1.msra.mxu0 0.0
        %802 = vmatprep.subr.mxu0 0.0
        %803 = vmatpush1.msra.mxu0 0.0
        %804 = vmatprep.subr.mxu0 0.0
        %805 = vmatpush1.msra.mxu0 0.0
        %806 = vmatprep.subr.mxu0 0.0
        %807 = vmatpush1.msra.mxu0 0.0
        %808 = vmatprep.subr.mxu0 0.0
        %809 = vmatpush1.msra.mxu0 0.0
        %810 = vmatprep.subr.mxu0 0.0
        %811 = vmatpush1.msra.mxu0 0.0
        %812 = vmatprep.subr.mxu0 0.0
        %813 = vmatpush1.msra.mxu0 0.0
        %814 = vmatprep.mubr.f32.mxu0 0.0
        %815 = vmatmul.mubr.f32.gmra.mrb[0].mxu0 %v745
        %v816 = vpop.f32.mrb[0].mxu0
        %v817 = vadd.f32 %v749, %v816
        %v818 = vpop.f32.mrb[0].mxu0
        %819 = vdwg.mxu0
        %v820 = vmax.f32 %v817, 0.0
        %s821 = scalar_lea.vmem [#allocation3], 32
        %822 = vst [vmem:[%s821] sm:$0xff] %v820
        %s823 = scalar_lea.vmem [#allocation2], 40
        %v824 = vld [vmem:[%s823] sm:$0xff]
        %825 = vmatprep.subr.mxu0 0.0
        %826 = vmatpush1.msra.mxu0 %v434
        %827 = vmatprep.subr.mxu0 0.0
        %828 = vmatpush1.msra.mxu0 %v435
        %829 = vmatprep.subr.mxu0 0.0
        %830 = vmatpush1.msra.mxu0 %v436
        %831 = vmatprep.subr.mxu0 0.0
        %832 = vmatpush1.msra.mxu0 %v437
        %833 = vmatprep.subr.mxu0 0.0
        %834 = vmatpush1.msra.mxu0 %v438
        %835 = vmatprep.subr.mxu0 0.0
        %836 = vmatpush1.msra.mxu0 %v439
        %837 = vmatprep.subr.mxu0 0.0
        %838 = vmatpush1.msra.mxu0 %v440
        %839 = vmatprep.subr.mxu0 0.0
        %840 = vmatpush1.msra.mxu0 %v441
        %841 = vmatprep.subr.mxu0 0.0
        %842 = vmatpush1.msra.mxu0 %v442
        %843 = vmatprep.subr.mxu0 0.0
        %844 = vmatpush1.msra.mxu0 %v443
        %845 = vmatprep.subr.mxu0 0.0
        %846 = vmatpush1.msra.mxu0 %v444
        %847 = vmatprep.subr.mxu0 0.0
        %848 = vmatpush1.msra.mxu0 %v445
        %849 = vmatprep.subr.mxu0 0.0
        %850 = vmatpush1.msra.mxu0 %v446
        %851 = vmatprep.subr.mxu0 0.0
        %852 = vmatpush1.msra.mxu0 %v447
        %853 = vmatprep.subr.mxu0 0.0
        %854 = vmatpush1.msra.mxu0 %v448
        %855 = vmatprep.subr.mxu0 0.0
        %856 = vmatpush1.msra.mxu0 %v449
        %857 = vmatprep.subr.mxu0 0.0
        %858 = vmatpush1.msra.mxu0 0.0
        %859 = vmatprep.subr.mxu0 0.0
        %860 = vmatpush1.msra.mxu0 0.0
        %861 = vmatprep.subr.mxu0 0.0
        %862 = vmatpush1.msra.mxu0 0.0
        %863 = vmatprep.subr.mxu0 0.0
        %864 = vmatpush1.msra.mxu0 0.0
        %865 = vmatprep.subr.mxu0 0.0
        %866 = vmatpush1.msra.mxu0 0.0
        %867 = vmatprep.subr.mxu0 0.0
        %868 = vmatpush1.msra.mxu0 0.0
        %869 = vmatprep.subr.mxu0 0.0
        %870 = vmatpush1.msra.mxu0 0.0
        %871 = vmatprep.subr.mxu0 0.0
        %872 = vmatpush1.msra.mxu0 0.0
        %873 = vmatprep.subr.mxu0 0.0
        %874 = vmatpush1.msra.mxu0 0.0
        %875 = vmatprep.subr.mxu0 0.0
        %876 = vmatpush1.msra.mxu0 0.0
        %877 = vmatprep.subr.mxu0 0.0
        %878 = vmatpush1.msra.mxu0 0.0
        %879 = vmatprep.subr.mxu0 0.0
        %880 = vmatpush1.msra.mxu0 0.0
        %881 = vmatprep.subr.mxu0 0.0
        %882 = vmatpush1.msra.mxu0 0.0
        %883 = vmatprep.subr.mxu0 0.0
        %884 = vmatpush1.msra.mxu0 0.0
        %885 = vmatprep.subr.mxu0 0.0
        %886 = vmatpush1.msra.mxu0 0.0
        %887 = vmatprep.subr.mxu0 0.0
        %888 = vmatpush1.msra.mxu0 0.0
        %889 = vmatprep.mubr.f32.mxu0 0.0
        %890 = vmatmul.mubr.f32.gmra.mrb[0].mxu0 %v820
        %v891 = vpop.f32.mrb[0].mxu0
        %v892 = vadd.f32 %v824, %v891
        %v893 = vpop.f32.mrb[0].mxu0
        %894 = vdwg.mxu0
        %v895 = vmax.f32 %v892, 0.0
        %s896 = scalar_lea.vmem [#allocation3], 40
        %897 = vst [vmem:[%s896] sm:$0xff] %v895
        %s898 = scalar_lea.vmem [#allocation2], 48
        %v899 = vld [vmem:[%s898] sm:$0xff]
        %900 = vmatprep.subr.mxu0 0.0
        %901 = vmatpush1.msra.mxu0 %v434
        %902 = vmatprep.subr.mxu0 0.0
        %903 = vmatpush1.msra.mxu0 %v435
        %904 = vmatprep.subr.mxu0 0.0
        %905 = vmatpush1.msra.mxu0 %v436
        %906 = vmatprep.subr.mxu0 0.0
        %907 = vmatpush1.msra.mxu0 %v437
        %908 = vmatprep.subr.mxu0 0.0
        %909 = vmatpush1.msra.mxu0 %v438
        %910 = vmatprep.subr.mxu0 0.0
        %911 = vmatpush1.msra.mxu0 %v439
        %912 = vmatprep.subr.mxu0 0.0
        %913 = vmatpush1.msra.mxu0 %v440
        %914 = vmatprep.subr.mxu0 0.0
        %915 = vmatpush1.msra.mxu0 %v441
        %916 = vmatprep.subr.mxu0 0.0
        %917 = vmatpush1.msra.mxu0 %v442
        %918 = vmatprep.subr.mxu0 0.0
        %919 = vmatpush1.msra.mxu0 %v443
        %920 = vmatprep.subr.mxu0 0.0
        %921 = vmatpush1.msra.mxu0 %v444
        %922 = vmatprep.subr.mxu0 0.0
        %923 = vmatpush1.msra.mxu0 %v445
        %924 = vmatprep.subr.mxu0 0.0
        %925 = vmatpush1.msra.mxu0 %v446
        %926 = vmatprep.subr.mxu0 0.0
        %927 = vmatpush1.msra.mxu0 %v447
        %928 = vmatprep.subr.mxu0 0.0
        %929 = vmatpush1.msra.mxu0 %v448
        %930 = vmatprep.subr.mxu0 0.0
        %931 = vmatpush1.msra.mxu0 %v449
        %932 = vmatprep.subr.mxu0 0.0
        %933 = vmatpush1.msra.mxu0 0.0
        %934 = vmatprep.subr.mxu0 0.0
        %935 = vmatpush1.msra.mxu0 0.0
        %936 = vmatprep.subr.mxu0 0.0
        %937 = vmatpush1.msra.mxu0 0.0
        %938 = vmatprep.subr.mxu0 0.0
        %939 = vmatpush1.msra.mxu0 0.0
        %940 = vmatprep.subr.mxu0 0.0
        %941 = vmatpush1.msra.mxu0 0.0
        %942 = vmatprep.subr.mxu0 0.0
        %943 = vmatpush1.msra.mxu0 0.0
        %944 = vmatprep.subr.mxu0 0.0
        %945 = vmatpush1.msra.mxu0 0.0
        %946 = vmatprep.subr.mxu0 0.0
        %947 = vmatpush1.msra.mxu0 0.0
        %948 = vmatprep.subr.mxu0 0.0
        %949 = vmatpush1.msra.mxu0 0.0
        %950 = vmatprep.subr.mxu0 0.0
        %951 = vmatpush1.msra.mxu0 0.0
        %952 = vmatprep.subr.mxu0 0.0
        %953 = vmatpush1.msra.mxu0 0.0
        %954 = vmatprep.subr.mxu0 0.0
        %955 = vmatpush1.msra.mxu0 0.0
        %956 = vmatprep.subr.mxu0 0.0
        %957 = vmatpush1.msra.mxu0 0.0
        %958 = vmatprep.subr.mxu0 0.0
        %959 = vmatpush1.msra.mxu0 0.0
        %960 = vmatprep.subr.mxu0 0.0
        %961 = vmatpush1.msra.mxu0 0.0
        %962 = vmatprep.subr.mxu0 0.0
        %963 = vmatpush1.msra.mxu0 0.0
        %964 = vmatprep.mubr.f32.mxu0 0.0
        %965 = vmatmul.mubr.f32.gmra.mrb[0].mxu0 %v895
        %v966 = vpop.f32.mrb[0].mxu0
        %v967 = vadd.f32 %v899, %v966
        %v968 = vpop.f32.mrb[0].mxu0
        %969 = vdwg.mxu0
        %v970 = vmax.f32 %v967, 0.0
        %s971 = scalar_lea.vmem [#allocation3], 48
        %972 = vst [vmem:[%s971] sm:$0xff] %v970
        %s973 = scalar_lea.vmem [#allocation2], 56
        %v974 = vld [vmem:[%s973] sm:$0xff]
        %975 = vmatprep.subr.mxu0 0.0
        %976 = vmatpush1.msra.mxu0 %v434
        %977 = vmatprep.subr.mxu0 0.0
        %978 = vmatpush1.msra.mxu0 %v435
        %979 = vmatprep.subr.mxu0 0.0
        %980 = vmatpush1.msra.mxu0 %v436
        %981 = vmatprep.subr.mxu0 0.0
        %982 = vmatpush1.msra.mxu0 %v437
        %983 = vmatprep.subr.mxu0 0.0
        %984 = vmatpush1.msra.mxu0 %v438
        %985 = vmatprep.subr.mxu0 0.0
        %986 = vmatpush1.msra.mxu0 %v439
        %987 = vmatprep.subr.mxu0 0.0
        %988 = vmatpush1.msra.mxu0 %v440
        %989 = vmatprep.subr.mxu0 0.0
        %990 = vmatpush1.msra.mxu0 %v441
        %991 = vmatprep.subr.mxu0 0.0
        %992 = vmatpush1.msra.mxu0 %v442
        %993 = vmatprep.subr.mxu0 0.0
        %994 = vmatpush1.msra.mxu0 %v443
        %995 = vmatprep.subr.mxu0 0.0
        %996 = vmatpush1.msra.mxu0 %v444
        %997 = vmatprep.subr.mxu0 0.0
        %998 = vmatpush1.msra.mxu0 %v445
        %999 = vmatprep.subr.mxu0 0.0
        %1000 = vmatpush1.msra.mxu0 %v446
        %1001 = vmatprep.subr.mxu0 0.0
        %1002 = vmatpush1.msra.mxu0 %v447
        %1003 = vmatprep.subr.mxu0 0.0
        %1004 = vmatpush1.msra.mxu0 %v448
        %1005 = vmatprep.subr.mxu0 0.0
        %1006 = vmatpush1.msra.mxu0 %v449
        %1007 = vmatprep.subr.mxu0 0.0
        %1008 = vmatpush1.msra.mxu0 0.0
        %1009 = vmatprep.subr.mxu0 0.0
        %1010 = vmatpush1.msra.mxu0 0.0
        %1011 = vmatprep.subr.mxu0 0.0
        %1012 = vmatpush1.msra.mxu0 0.0
        %1013 = vmatprep.subr.mxu0 0.0
        %1014 = vmatpush1.msra.mxu0 0.0
        %1015 = vmatprep.subr.mxu0 0.0
        %1016 = vmatpush1.msra.mxu0 0.0
        %1017 = vmatprep.subr.mxu0 0.0
        %1018 = vmatpush1.msra.mxu0 0.0
        %1019 = vmatprep.subr.mxu0 0.0
        %1020 = vmatpush1.msra.mxu0 0.0
        %1021 = vmatprep.subr.mxu0 0.0
        %1022 = vmatpush1.msra.mxu0 0.0
        %1023 = vmatprep.subr.mxu0 0.0
        %1024 = vmatpush1.msra.mxu0 0.0
        %1025 = vmatprep.subr.mxu0 0.0
        %1026 = vmatpush1.msra.mxu0 0.0
        %1027 = vmatprep.subr.mxu0 0.0
        %1028 = vmatpush1.msra.mxu0 0.0
        %1029 = vmatprep.subr.mxu0 0.0
        %1030 = vmatpush1.msra.mxu0 0.0
        %1031 = vmatprep.subr.mxu0 0.0
        %1032 = vmatpush1.msra.mxu0 0.0
        %1033 = vmatprep.subr.mxu0 0.0
        %1034 = vmatpush1.msra.mxu0 0.0
        %1035 = vmatprep.subr.mxu0 0.0
        %1036 = vmatpush1.msra.mxu0 0.0
        %1037 = vmatprep.subr.mxu0 0.0
        %1038 = vmatpush1.msra.mxu0 0.0
        %1039 = vmatprep.mubr.f32.mxu0 0.0
        %1040 = vmatmul.mubr.f32.gmra.mrb[0].mxu0 %v970
        %v1041 = vpop.f32.mrb[0].mxu0
        %v1042 = vadd.f32 %v974, %v1041
        %v1043 = vpop.f32.mrb[0].mxu0
        %1044 = vdwg.mxu0
        %v1045 = vmax.f32 %v1042, 0.0
        %s1046 = scalar_lea.vmem [#allocation3], 56
        %1047 = vst [vmem:[%s1046] sm:$0xff] %v1045
        %1048 = vst [vmem:[%s279] sm:$0xff] %v1045
        %v1049 = vld [vmem:[#allocation3] sm:$0xff]
        %v1050 = vld [vmem:[#allocation3 + $0x8] sm:$0xff]
        %v1051 = vld [vmem:[#allocation3 + $0x10] sm:$0xff]
        %v1052 = vld [vmem:[#allocation3 + $0x18] sm:$0xff]
        %v1053 = vld [vmem:[#allocation3 + $0x20] sm:$0xff]
        %v1054 = vld [vmem:[#allocation3 + $0x28] sm:$0xff]
        %v1055 = vld [vmem:[#allocation3 + $0x30] sm:$0xff]
        %v1056 = vld [vmem:[#allocation3 + $0x38] sm:$0xff]
        %v1057 = vld [vmem:[%s4] sm:$0xff]
        %v1058 = vld [vmem:[%s4 + $0x8] sm:$0xff]
        %v1059 = vld [vmem:[%s4 + $0x10] sm:$0xff]
        %v1060 = vld [vmem:[%s4 + $0x18] sm:$0xff]
        %v1061 = vld [vmem:[%s4 + $0x20] sm:$0xff]
        %v1062 = vld [vmem:[%s4 + $0x28] sm:$0xff]
        %v1063 = vld [vmem:[%s4 + $0x30] sm:$0xff]
        %v1064 = vld [vmem:[%s4 + $0x38] sm:$0xff]
        %v1065 = vld [vmem:[%s4 + $0x40] sm:$0xff]
        %v1066 = vld [vmem:[%s4 + $0x48] sm:$0xff]
        %v1067 = vld [vmem:[%s4 + $0x50] sm:$0xff]
        %v1068 = vld [vmem:[%s4 + $0x58] sm:$0xff]
        %v1069 = vld [vmem:[%s4 + $0x60] sm:$0xff]
        %v1070 = vld [vmem:[%s4 + $0x68] sm:$0xff]
        %v1071 = vld [vmem:[%s4 + $0x70] sm:$0xff]
        %v1072 = vld [vmem:[%s4 + $0x78] sm:$0xff]
        %v1073 = vld [vmem:[%s5] sm:$0x1]
        %v1075 = vlaneseq
        %v1076 = vshrl.u32 %v1075, 7
        %v1077 = vsub.s32 0, %v1076
        %v1078 = vrot.slane %v1073, %v1077
        %1080 = vmatprep.subr.mxu0 0.0
        %1081 = vmatpush1.msra.mxu0 %v1057
        %1082 = vmatprep.subr.mxu0 0.0
        %1083 = vmatpush1.msra.mxu0 %v1058
        %1084 = vmatprep.subr.mxu0 0.0
        %1085 = vmatpush1.msra.mxu0 %v1059
        %1086 = vmatprep.subr.mxu0 0.0
        %1087 = vmatpush1.msra.mxu0 %v1060
        %1088 = vmatprep.subr.mxu0 0.0
        %1089 = vmatpush1.msra.mxu0 %v1061
        %1090 = vmatprep.subr.mxu0 0.0
        %1091 = vmatpush1.msra.mxu0 %v1062
        %1092 = vmatprep.subr.mxu0 0.0
        %1093 = vmatpush1.msra.mxu0 %v1063
        %1094 = vmatprep.subr.mxu0 0.0
        %1095 = vmatpush1.msra.mxu0 %v1064
        %1096 = vmatprep.subr.mxu0 0.0
        %1097 = vmatpush1.msra.mxu0 %v1065
        %1098 = vmatprep.subr.mxu0 0.0
        %1099 = vmatpush1.msra.mxu0 %v1066
        %1100 = vmatprep.subr.mxu0 0.0
        %1101 = vmatpush1.msra.mxu0 %v1067
        %1102 = vmatprep.subr.mxu0 0.0
        %1103 = vmatpush1.msra.mxu0 %v1068
        %1104 = vmatprep.subr.mxu0 0.0
        %1105 = vmatpush1.msra.mxu0 %v1069
        %1106 = vmatprep.subr.mxu0 0.0
        %1107 = vmatpush1.msra.mxu0 %v1070
        %1108 = vmatprep.subr.mxu0 0.0
        %1109 = vmatpush1.msra.mxu0 %v1071
        %1110 = vmatprep.subr.mxu0 0.0
        %1111 = vmatpush1.msra.mxu0 %v1072
        %1112 = vmatprep.subr.mxu0 0.0
        %1113 = vmatpush1.msra.mxu0 0.0
        %1114 = vmatprep.subr.mxu0 0.0
        %1115 = vmatpush1.msra.mxu0 0.0
        %1116 = vmatprep.subr.mxu0 0.0
        %1117 = vmatpush1.msra.mxu0 0.0
        %1118 = vmatprep.subr.mxu0 0.0
        %1119 = vmatpush1.msra.mxu0 0.0
        %1120 = vmatprep.subr.mxu0 0.0
        %1121 = vmatpush1.msra.mxu0 0.0
        %1122 = vmatprep.subr.mxu0 0.0
        %1123 = vmatpush1.msra.mxu0 0.0
        %1124 = vmatprep.subr.mxu0 0.0
        %1125 = vmatpush1.msra.mxu0 0.0
        %1126 = vmatprep.subr.mxu0 0.0
        %1127 = vmatpush1.msra.mxu0 0.0
        %1128 = vmatprep.subr.mxu0 0.0
        %1129 = vmatpush1.msra.mxu0 0.0
        %1130 = vmatprep.subr.mxu0 0.0
        %1131 = vmatpush1.msra.mxu0 0.0
        %1132 = vmatprep.subr.mxu0 0.0
        %1133 = vmatpush1.msra.mxu0 0.0
        %1134 = vmatprep.subr.mxu0 0.0
        %1135 = vmatpush1.msra.mxu0 0.0
        %1136 = vmatprep.subr.mxu0 0.0
        %1137 = vmatpush1.msra.mxu0 0.0
        %1138 = vmatprep.subr.mxu0 0.0
        %1139 = vmatpush1.msra.mxu0 0.0
        %1140 = vmatprep.subr.mxu0 0.0
        %1141 = vmatpush1.msra.mxu0 0.0
        %1142 = vmatprep.subr.mxu0 0.0
        %1143 = vmatpush1.msra.mxu0 0.0
        %1144 = vmatprep.mubr.f32.mxu0 0.0
        %1145 = vmatmul.mubr.f32.gmra.mrb[0].mxu0 %v1049
        %v1146 = vpop.f32.mrb[0].mxu0
        %v1147 = vadd.f32 %v1078, %v1146
        %v1148 = vpop.f32.mrb[0].mxu0
        %1149 = vmatprep.mubr.f32.mxu0 0.0
        %1150 = vmatmul.mubr.f32.gmra.mrb[0].mxu0 %v1050
        %v1151 = vpop.f32.mrb[0].mxu0
        %v1152 = vadd.f32 %v1078, %v1151
        %v1153 = vpop.f32.mrb[0].mxu0
        %1154 = vmatprep.mubr.f32.mxu0 0.0
        %1155 = vmatmul.mubr.f32.gmra.mrb[0].mxu0 %v1051
        %v1156 = vpop.f32.mrb[0].mxu0
        %v1157 = vadd.f32 %v1078, %v1156
        %v1158 = vpop.f32.mrb[0].mxu0
        %1159 = vmatprep.mubr.f32.mxu0 0.0
        %1160 = vmatmul.mubr.f32.gmra.mrb[0].mxu0 %v1052
        %v1161 = vpop.f32.mrb[0].mxu0
        %v1162 = vadd.f32 %v1078, %v1161
        %v1163 = vpop.f32.mrb[0].mxu0
        %1164 = vmatprep.mubr.f32.mxu0 0.0
        %1165 = vmatmul.mubr.f32.gmra.mrb[0].mxu0 %v1053
        %v1166 = vpop.f32.mrb[0].mxu0
        %v1167 = vadd.f32 %v1078, %v1166
        %v1168 = vpop.f32.mrb[0].mxu0
        %1169 = vmatprep.mubr.f32.mxu0 0.0
        %1170 = vmatmul.mubr.f32.gmra.mrb[0].mxu0 %v1054
        %v1171 = vpop.f32.mrb[0].mxu0
        %v1172 = vadd.f32 %v1078, %v1171
        %v1173 = vpop.f32.mrb[0].mxu0
        %1174 = vmatprep.mubr.f32.mxu0 0.0
        %1175 = vmatmul.mubr.f32.gmra.mrb[0].mxu0 %v1055
        %v1176 = vpop.f32.mrb[0].mxu0
        %v1177 = vadd.f32 %v1078, %v1176
        %v1178 = vpop.f32.mrb[0].mxu0
        %1179 = vmatprep.mubr.f32.mxu0 0.0
        %1180 = vmatmul.mubr.f32.gmra.mrb[0].mxu0 %v1056
        %v1181 = vpop.f32.mrb[0].mxu0
        %v1182 = vadd.f32 %v1078, %v1181
        %v1183 = vpop.f32.mrb[0].mxu0
        %1184 = vdwg.mxu0
        %1185 = vst [vmem:[%s289] sm:$0xff] %v1147
        %1186 = vst [vmem:[%s289 + $0x8] sm:$0xff] %v1152
        %1187 = vst [vmem:[%s289 + $0x10] sm:$0xff] %v1157
        %1188 = vst [vmem:[%s289 + $0x18] sm:$0xff] %v1162
        %1189 = vst [vmem:[%s289 + $0x20] sm:$0xff] %v1167
        %1190 = vst [vmem:[%s289 + $0x28] sm:$0xff] %v1172
        %1191 = vst [vmem:[%s289 + $0x30] sm:$0xff] %v1177
        %1192 = vst [vmem:[%s289 + $0x38] sm:$0xff] %v1182
        %p1193 = scmp.lt.s32.totalorder %s22, 1
        %s1194 = scalar_select %p1193, %s22, 1
        %s1195 = smul.addr %s1194, 8
        %s1196 = smul.addr %s1195, 8
        %s1197 = scalar_lea.vmem %s6, %s1196
        %s1198 = sand.u32 %s187, 1
        %s1199 = scalar_lea.sflag [#allocation5], %s1198
        %s1200 = sand.u32 %s187, 1
        %s1201 = smul.addr %s1200, 8
        %s1202 = scalar_lea.vmem [#allocation4], %s1201
        // Predicated region
        $region45: #{rnn_predict.1} parent=43 // pred_check
          %p1203 = pneg %p171
        $region46: #{rnn_predict.1} parent=43 // pred_check_branch
          %1205 = sbr.rel (%p1203) target = $region48
        $region47: #{rnn_predict.1} parent=43 // pred_region
          _
        $region48: #{rnn_predict.1} parent=43 // pred_fallthru
          _
        // Predicated region
        $region49: #{rnn_predict.1} parent=43 // pred_check
          %p1206 = pneg %p197
        $region50: #{rnn_predict.1} parent=43 // pred_check_branch
          %1208 = sbr.rel (%p1206) target = $region52
        $region51: #{rnn_predict.1} parent=43 // pred_region
          %s1210 = ssub.s32 128, 128
          %1211 = vsyncadd %s1199, %s1210
          %s1212 = smul.addr %s22, 128
          %s1213 = scalar_lea.hbm %s7, %s1212
          %s1215 = sshll.u32 %s1202, 4
          %s1216 = int_to_ptr.vmem [resolvable:$true] %s1215
          %1218 = dma.vmem_to_hbm [thread:$0]  %s1216, 128, %s1213, %s1199
        $region52: #{rnn_predict.1} parent=43 // pred_fallthru
          _
      $region44: #{rnn_predict.1} parent=5 // pred_fallthru
        _
      %p1219 = scmp.le.s32.totalorder 2, %s17
      // Predicated region
      $region53: #{rnn_predict.1} parent=5 // pred_check
        %p1220 = pneg %p1219
      $region54: #{rnn_predict.1} parent=5 // pred_check_branch
        %1222 = sbr.rel (%p1220) target = $region56
      $region55: #{rnn_predict.1} parent=5 // pred_region
        %s1223 = ssub.s32 %s17, 2
        // Predicated region
        $region57: #{rnn_predict.1} parent=55 // pred_check
          %p1224 = pneg %p177
        $region58: #{rnn_predict.1} parent=55 // pred_check_branch
          %1226 = sbr.rel (%p1224) target = $region60
        $region59: #{rnn_predict.1} parent=55 // pred_region
          %p1227 = scmp.lt.s32.totalorder %s23, 1
          %s1228 = scalar_select %p1227, %s23, 1
          %s1229 = smul.addr %s1228, 8
          %s1230 = smul.addr %s1229, 8
          %s1231 = scalar_lea.vmem %s6, %s1230
        $region60: #{rnn_predict.1} parent=55 // pred_fallthru
          _
        // Predicated region
        $region61: #{rnn_predict.1} parent=55 // pred_check
          %p1232 = pneg %p203
        $region62: #{rnn_predict.1} parent=55 // pred_check_branch
          %1234 = sbr.rel (%p1232) target = $region64
        $region63: #{rnn_predict.1} parent=55 // pred_region
          %s1235 = sand.u32 %s188, 1
          %s1236 = scalar_lea.sflag [#allocation5], %s1235
          %s1237 = sand.u32 %s188, 1
          %s1238 = smul.addr %s1237, 8
          %s1239 = scalar_lea.vmem [#allocation4], %s1238
          %1240 = dma.done %s1236, 128
        $region64: #{rnn_predict.1} parent=55 // pred_fallthru
          _
      $region56: #{rnn_predict.1} parent=5 // pred_fallthru
        _
    $region6: #{rnn_predict.1} parent=1 // loop_footer
      %s21 = sadd.s32 1, %s17
    $region7: #{rnn_predict.1} parent=1 // loop_footer_branch
      %16 = sbr.rel target = $region3
    $region8: #{rnn_predict.1} parent=1 // loop_exit
      _
    %1241 = vsyncpa [#allocation5], 1
    %s1242 = scalar_lea.sflag [#allocation5], 1
    %1243 = vsyncpa %s1242, 1

</llo_original>
